<compile_context>
chip_gen: v7x
topology: tpu7x:2x2x1
jax: 0.10.0
libtpu: 0.0.40
codegen_flags: <defaults>
</compile_context>

<pallas_src>
import jax
import jax.numpy as jnp
from jax import lax
from jax.experimental import pallas as pl
from jax.experimental.pallas import tpu as pltpu


NEG_SLOPE = 0.01   # PyTorch LeakyReLU default
BN_EPS = 1e-5      # PyTorch BatchNorm1d default
LANE = 128
SUBLANE = 8


def _round_up(n, m):
    return (n + m - 1) // m * m


def _make_kernel(n_blocks, real_batch, out_features):
    """Fused kernel: n_blocks x (Linear + LeakyReLU + BN) + Linear + Softmax.
    Everything is lane-padded to width W; `real_batch` rows are real, the rest
    are padding excluded from BN statistics and from the softmax lanes."""
    inv_n = 1.0 / float(real_batch)

    def kernel(x_ref, w_ref, v_ref, o_ref):
        b_pad, wpad = x_ref.shape
        h = x_ref[...]                                     # bf16 (B_pad, W)

        # rows >= real_batch are padding -> exclude from BN mean/var
        row_mask = (lax.broadcasted_iota(jnp.int32, (b_pad, 1), 0)
                    < real_batch).astype(jnp.float32)

        for i in range(n_blocks):
            w = w_ref[i]                                   # bf16 (W, W)
            b = v_ref[3 * i:3 * i + 1, :]                  # f32  (1, W)
            g = v_ref[3 * i + 1:3 * i + 2, :]              # BN gamma
            bt = v_ref[3 * i + 2:3 * i + 3, :]             # BN beta

            # Linear: bf16 MXU inputs, f32 accumulation.  First layer's input
            # is already bf16 (wrapper casts x), later layers come out of BN
            # in f32, so only those need the pack.
            h_mm = h if h.dtype == jnp.bfloat16 else h.astype(jnp.bfloat16)
            h = jnp.dot(h_mm, w, preferred_element_type=jnp.float32) + b
            # LeakyReLU (single max instead of compare+select)
            h = jnp.maximum(h, NEG_SLOPE * h)
            # BatchNorm1d, training-mode batch stats over real rows only,
            # single pass: mask once, reduce sum and sum-of-squares together.
            hm = h * row_mask
            sum1 = jnp.sum(hm, axis=0, keepdims=True)
            sumsq = jnp.sum(hm * h, axis=0, keepdims=True)
            mean = sum1 * inv_n
            var = sumsq * inv_n - mean * mean
            scale = g * lax.rsqrt(var + BN_EPS)
            h = h * scale + (bt - mean * scale)

        # Final Linear
        w = w_ref[n_blocks]
        b = v_ref[3 * n_blocks:3 * n_blocks + 1, :]
        logits = jnp.dot(h.astype(jnp.bfloat16), w,
                         preferred_element_type=jnp.float32) + b

        # Softmax over the real output lanes only (padded lanes -> -inf-ish)
        col_mask = lax.broadcasted_iota(jnp.int32, (1, wpad), 1) < out_features
        logits = jnp.where(col_mask, logits, -1e30)
        m = jnp.max(logits, axis=-1, keepdims=True)
        e = jnp.exp(logits - m)
        denom = jnp.sum(e, axis=-1, keepdims=True)
        probs = e * pl.reciprocal(denom, approx=False)     # exact: denom is (B,1)

        o_ref[...] = probs.astype(o_ref.dtype)

    return kernel


def image_classifier_forward(x, params):
    """params: flat list [w0, b0, g0, beta0, ..., w_final, b_final] with
    weights stored as (in_features, out_features).  Packs everything into two
    lane-dense buffers and runs one grid-less pallas_call."""
    n_blocks = (len(params) - 2) // 4
    batch, in_features = x.shape
    out_features = params[-1].shape[-1]

    dims = [in_features] + [params[4 * i].shape[1] for i in range(n_blocks)] \
           + [out_features]
    wpad = _round_up(max(dims), LANE)        # single lane-dense width
    b_pad = _round_up(batch, SUBLANE)        # sublane-aligned batch

    # ---- pack parameters: 1 weight buffer (bf16) + 1 vector buffer (f32) ----
    # NOTE: zero padding is load-bearing -- padded lanes stay exactly 0 through
    # every layer because gamma-pad=0 makes the BN scale 0 there.
    w_list, v_list = [], []
    idx = 0
    for _ in range(n_blocks):
        w, b, g, bt = params[idx:idx + 4]
        idx += 4
        w_list.append(jnp.pad(w, ((0, wpad - w.shape[0]),
                                  (0, wpad - w.shape[1]))))
        for v in (b, g, bt):
            v2 = v.reshape(1, -1)
            v_list.append(jnp.pad(v2, ((0, 0), (0, wpad - v2.shape[-1]))))
    wf, bf = params[idx], params[idx + 1]
    w_list.append(jnp.pad(wf, ((0, wpad - wf.shape[0]),
                               (0, wpad - wf.shape[1]))))
    bf2 = bf.reshape(1, -1)
    v_list.append(jnp.pad(bf2, ((0, 0), (0, wpad - bf2.shape[-1]))))

    w_packed = jnp.stack(w_list).astype(jnp.bfloat16)           # (L, W, W)
    v_packed = jnp.concatenate(v_list, axis=0).astype(jnp.float32)  # (3n+1, W)

    # x shipped as bf16: half the DMA and no in-kernel pack before matmul #0.
    x_pad = jnp.pad(x.astype(jnp.float32),
                    ((0, b_pad - batch), (0, wpad - in_features))
                    ).astype(jnp.bfloat16)

    kernel = _make_kernel(n_blocks, batch, out_features)
    vmem = pl.BlockSpec(memory_space=pltpu.MemorySpace.VMEM)

    out = pl.pallas_call(
        kernel,
        out_shape=jax.ShapeDtypeStruct((b_pad, wpad), jnp.float32),
        in_specs=[vmem, vmem, vmem],
        out_specs=vmem,
        compiler_params=pltpu.CompilerParams(
            vmem_limit_bytes=4 * 1024 * 1024),
    )(x_pad, w_packed, v_packed)

    return out[:batch, :out_features]


def init_params(key, input_size, hidden_sizes, output_size):
    """Deterministic synthetic parameters (PyTorch-style uniform init)."""
    params = []
    sizes = [input_size] + list(hidden_sizes)
    k = key
    for i in range(len(hidden_sizes)):
        fan_in, fan_out = sizes[i], sizes[i + 1]
        k, kw, kb, kg, kbt = jax.random.split(k, 5)
        bound = 1.0 / jnp.sqrt(fan_in)
        w = jax.random.uniform(kw, (fan_in, fan_out), jnp.float32, -bound, bound)
        b = jax.random.uniform(kb, (1, fan_out), jnp.float32, -bound, bound)
        gamma = 1.0 + 0.1 * jax.random.normal(kg, (1, fan_out), jnp.float32)
        beta = 0.1 * jax.random.normal(kbt, (1, fan_out), jnp.float32)
        params += [w, b, gamma, beta]
    fan_in = sizes[-1]
    k, kw, kb = jax.random.split(k, 3)
    bound = 1.0 / jnp.sqrt(fan_in)
    w = jax.random.uniform(kw, (fan_in, output_size), jnp.float32, -bound, bound)
    b = jax.random.uniform(kb, (1, output_size), jnp.float32, -bound, bound)
    params += [w, b]
    return params


def reference_forward(x, params):
    """Pure-JAX f32 reference (training-mode BN, LeakyReLU 0.01, softmax)."""
    n_blocks = (len(params) - 2) // 4
    h = x.astype(jnp.float32)
    idx = 0
    for _ in range(n_blocks):
        w, b, g, bt = params[idx:idx + 4]
        idx += 4
        h = h @ w + b
        h = jnp.where(h > 0, h, NEG_SLOPE * h)
        mean = jnp.mean(h, axis=0, keepdims=True)
        var = jnp.mean((h - mean) ** 2, axis=0, keepdims=True)
        h = (h - mean) * lax.rsqrt(var + BN_EPS) * g + bt
    logits = h @ params[idx] + params[idx + 1]
    return jax.nn.softmax(logits, axis=-1)


if __name__ == "__main__":
    # Small flattened-image MLP shapes.  batch=60 is deliberately not a
    # sublane multiple so the BN row-masking path is exercised (padded to 64).
    batch = 60
    input_size = 64          # e.g. flattened 8x8 image
    hidden_sizes = [128, 96, 64, 48, 32]
    output_size = 10

    key = jax.random.PRNGKey(0)
    kx, kp = jax.random.split(key)
    x = jax.random.normal(kx, (batch, input_size), jnp.float32)
    params = init_params(kp, input_size, hidden_sizes, output_size)

    out = jax.block_until_ready(image_classifier_forward(x, params))
    ref = reference_forward(x, params)

    assert out.shape == (batch, output_size)
    # Exact softmax reciprocal -> rows sum to 1 up to f32 rounding.
    assert jnp.allclose(jnp.sum(out, axis=-1), 1.0, atol=1e-3)
    # bf16 matmul inputs -> loosened tolerance vs f32 reference.
    assert jnp.allclose(out, ref, atol=2e-2, rtol=2e-2)

    print("KERNEL_OK")
</pallas_src>

<mosaic_0001>
module attributes {stable_mosaic.version = 11 : i64} {
  func.func @kernel(%arg0: memref<64x128xbf16, #tpu.memory_space<vmem>>, %arg1: memref<6x128x128xbf16, #tpu.memory_space<vmem>>, %arg2: memref<16x128xf32, #tpu.memory_space<vmem>>, %arg3: memref<64x128xf32, #tpu.memory_space<vmem>>) attributes {dimension_semantics = [], scalar_prefetch = 0 : i64, scratch_operands = 0 : i64, tpu.core_type = #tpu.core_type<tc>} {
    %c0 = arith.constant 0 : index
    %c0_0 = arith.constant 0 : index
    %0 = vector.load %arg0[%c0, %c0_0] : memref<64x128xbf16, #tpu.memory_space<vmem>>, vector<64x128xbf16>
    %1 = tpu.iota {dimensions = array<i32: 0>} : vector<64x1xi32>
    %c60_i32 = arith.constant 60 : i32
    %2 = vector.broadcast %c60_i32 : i32 to vector<64x1xi32>
    %3 = arith.cmpi slt, %1, %2 : vector<64x1xi32>
    %4 = arith.extui %3 : vector<64x1xi1> to vector<64x1xi32>
    %5 = arith.sitofp %4 : vector<64x1xi32> to vector<64x1xf32>
    %c0_1 = arith.constant 0 : index
    %c0_2 = arith.constant 0 : index
    %c0_3 = arith.constant 0 : index
    %6 = vector.load %arg1[%c0_1, %c0_2, %c0_3] : memref<6x128x128xbf16, #tpu.memory_space<vmem>>, vector<1x128x128xbf16>
    %7 = vector.shape_cast %6 : vector<1x128x128xbf16> to vector<128x128xbf16>
    %c0_4 = arith.constant 0 : index
    %c0_5 = arith.constant 0 : index
    %8 = vector.load %arg2[%c0_4, %c0_5] : memref<16x128xf32, #tpu.memory_space<vmem>>, vector<1x128xf32>
    %c1 = arith.constant 1 : index
    %c0_6 = arith.constant 0 : index
    %9 = vector.load %arg2[%c1, %c0_6] : memref<16x128xf32, #tpu.memory_space<vmem>>, vector<1x128xf32>
    %c2 = arith.constant 2 : index
    %c0_7 = arith.constant 0 : index
    %10 = vector.load %arg2[%c2, %c0_7] : memref<16x128xf32, #tpu.memory_space<vmem>>, vector<1x128xf32>
    %cst = arith.constant dense<0.000000e+00> : vector<64x128xf32>
    %11 = tpu.matmul %0, %7, %cst {dimension_numbers = #tpu.dot_dimension_numbers<[1], [0], [0], [1], [0, 0, 1, 1], [], []>} : vector<64x128xbf16>, vector<128x128xbf16>, vector<64x128xf32> -> vector<64x128xf32>
    %12 = vector.broadcast %8 : vector<1x128xf32> to vector<64x128xf32>
    %13 = arith.addf %11, %12 : vector<64x128xf32>
    %cst_8 = arith.constant 0.00999999977 : f32
    %14 = vector.broadcast %cst_8 : f32 to vector<64x128xf32>
    %15 = arith.mulf %14, %13 : vector<64x128xf32>
    %16 = arith.maximumf %13, %15 : vector<64x128xf32>
    %17 = vector.broadcast %5 : vector<64x1xf32> to vector<64x128xf32>
    %18 = arith.mulf %16, %17 : vector<64x128xf32>
    %cst_9 = arith.constant dense<0.000000e+00> : vector<128xf32>
    %19 = vector.multi_reduction <add>, %18, %cst_9 [0] : vector<64x128xf32> to vector<128xf32>
    %20 = vector.shape_cast %19 : vector<128xf32> to vector<1x128xf32>
    %21 = arith.mulf %18, %16 : vector<64x128xf32>
    %cst_10 = arith.constant dense<0.000000e+00> : vector<128xf32>
    %22 = vector.multi_reduction <add>, %21, %cst_10 [0] : vector<64x128xf32> to vector<128xf32>
    %23 = vector.shape_cast %22 : vector<128xf32> to vector<1x128xf32>
    %cst_11 = arith.constant 0.0166666675 : f32
    %24 = vector.broadcast %cst_11 : f32 to vector<1x128xf32>
    %25 = arith.mulf %20, %24 : vector<1x128xf32>
    %cst_12 = arith.constant 0.0166666675 : f32
    %26 = vector.broadcast %cst_12 : f32 to vector<1x128xf32>
    %27 = arith.mulf %23, %26 : vector<1x128xf32>
    %28 = arith.mulf %25, %25 : vector<1x128xf32>
    %29 = arith.subf %27, %28 : vector<1x128xf32>
    %cst_13 = arith.constant 9.99999974E-6 : f32
    %30 = vector.broadcast %cst_13 : f32 to vector<1x128xf32>
    %31 = arith.addf %29, %30 : vector<1x128xf32>
    %32 = math.rsqrt %31 : vector<1x128xf32>
    %33 = arith.mulf %9, %32 : vector<1x128xf32>
    %34 = vector.broadcast %33 : vector<1x128xf32> to vector<64x128xf32>
    %35 = arith.mulf %16, %34 : vector<64x128xf32>
    %36 = arith.mulf %25, %33 : vector<1x128xf32>
    %37 = arith.subf %10, %36 : vector<1x128xf32>
    %38 = vector.broadcast %37 : vector<1x128xf32> to vector<64x128xf32>
    %39 = arith.addf %35, %38 : vector<64x128xf32>
    %c1_14 = arith.constant 1 : index
    %c0_15 = arith.constant 0 : index
    %c0_16 = arith.constant 0 : index
    %40 = vector.load %arg1[%c1_14, %c0_15, %c0_16] : memref<6x128x128xbf16, #tpu.memory_space<vmem>>, vector<1x128x128xbf16>
    %41 = vector.shape_cast %40 : vector<1x128x128xbf16> to vector<128x128xbf16>
    %c3 = arith.constant 3 : index
    %c0_17 = arith.constant 0 : index
    %42 = vector.load %arg2[%c3, %c0_17] : memref<16x128xf32, #tpu.memory_space<vmem>>, vector<1x128xf32>
    %c4 = arith.constant 4 : index
    %c0_18 = arith.constant 0 : index
    %43 = vector.load %arg2[%c4, %c0_18] : memref<16x128xf32, #tpu.memory_space<vmem>>, vector<1x128xf32>
    %c5 = arith.constant 5 : index
    %c0_19 = arith.constant 0 : index
    %44 = vector.load %arg2[%c5, %c0_19] : memref<16x128xf32, #tpu.memory_space<vmem>>, vector<1x128xf32>
    %45 = arith.truncf %39 : vector<64x128xf32> to vector<64x128xbf16>
    %cst_20 = arith.constant dense<0.000000e+00> : vector<64x128xf32>
    %46 = tpu.matmul %45, %41, %cst_20 {dimension_numbers = #tpu.dot_dimension_numbers<[1], [0], [0], [1], [0, 0, 1, 1], [], []>} : vector<64x128xbf16>, vector<128x128xbf16>, vector<64x128xf32> -> vector<64x128xf32>
    %47 = vector.broadcast %42 : vector<1x128xf32> to vector<64x128xf32>
    %48 = arith.addf %46, %47 : vector<64x128xf32>
    %cst_21 = arith.constant 0.00999999977 : f32
    %49 = vector.broadcast %cst_21 : f32 to vector<64x128xf32>
    %50 = arith.mulf %49, %48 : vector<64x128xf32>
    %51 = arith.maximumf %48, %50 : vector<64x128xf32>
    %52 = vector.broadcast %5 : vector<64x1xf32> to vector<64x128xf32>
    %53 = arith.mulf %51, %52 : vector<64x128xf32>
    %cst_22 = arith.constant dense<0.000000e+00> : vector<128xf32>
    %54 = vector.multi_reduction <add>, %53, %cst_22 [0] : vector<64x128xf32> to vector<128xf32>
    %55 = vector.shape_cast %54 : vector<128xf32> to vector<1x128xf32>
    %56 = arith.mulf %53, %51 : vector<64x128xf32>
    %cst_23 = arith.constant dense<0.000000e+00> : vector<128xf32>
    %57 = vector.multi_reduction <add>, %56, %cst_23 [0] : vector<64x128xf32> to vector<128xf32>
    %58 = vector.shape_cast %57 : vector<128xf32> to vector<1x128xf32>
    %cst_24 = arith.constant 0.0166666675 : f32
    %59 = vector.broadcast %cst_24 : f32 to vector<1x128xf32>
    %60 = arith.mulf %55, %59 : vector<1x128xf32>
    %cst_25 = arith.constant 0.0166666675 : f32
    %61 = vector.broadcast %cst_25 : f32 to vector<1x128xf32>
    %62 = arith.mulf %58, %61 : vector<1x128xf32>
    %63 = arith.mulf %60, %60 : vector<1x128xf32>
    %64 = arith.subf %62, %63 : vector<1x128xf32>
    %cst_26 = arith.constant 9.99999974E-6 : f32
    %65 = vector.broadcast %cst_26 : f32 to vector<1x128xf32>
    %66 = arith.addf %64, %65 : vector<1x128xf32>
    %67 = math.rsqrt %66 : vector<1x128xf32>
    %68 = arith.mulf %43, %67 : vector<1x128xf32>
    %69 = vector.broadcast %68 : vector<1x128xf32> to vector<64x128xf32>
    %70 = arith.mulf %51, %69 : vector<64x128xf32>
    %71 = arith.mulf %60, %68 : vector<1x128xf32>
    %72 = arith.subf %44, %71 : vector<1x128xf32>
    %73 = vector.broadcast %72 : vector<1x128xf32> to vector<64x128xf32>
    %74 = arith.addf %70, %73 : vector<64x128xf32>
    %c2_27 = arith.constant 2 : index
    %c0_28 = arith.constant 0 : index
    %c0_29 = arith.constant 0 : index
    %75 = vector.load %arg1[%c2_27, %c0_28, %c0_29] : memref<6x128x128xbf16, #tpu.memory_space<vmem>>, vector<1x128x128xbf16>
    %76 = vector.shape_cast %75 : vector<1x128x128xbf16> to vector<128x128xbf16>
    %c6 = arith.constant 6 : index
    %c0_30 = arith.constant 0 : index
    %77 = vector.load %arg2[%c6, %c0_30] : memref<16x128xf32, #tpu.memory_space<vmem>>, vector<1x128xf32>
    %c7 = arith.constant 7 : index
    %c0_31 = arith.constant 0 : index
    %78 = vector.load %arg2[%c7, %c0_31] : memref<16x128xf32, #tpu.memory_space<vmem>>, vector<1x128xf32>
    %c8 = arith.constant 8 : index
    %c0_32 = arith.constant 0 : index
    %79 = vector.load %arg2[%c8, %c0_32] : memref<16x128xf32, #tpu.memory_space<vmem>>, vector<1x128xf32>
    %80 = arith.truncf %74 : vector<64x128xf32> to vector<64x128xbf16>
    %cst_33 = arith.constant dense<0.000000e+00> : vector<64x128xf32>
    %81 = tpu.matmul %80, %76, %cst_33 {dimension_numbers = #tpu.dot_dimension_numbers<[1], [0], [0], [1], [0, 0, 1, 1], [], []>} : vector<64x128xbf16>, vector<128x128xbf16>, vector<64x128xf32> -> vector<64x128xf32>
    %82 = vector.broadcast %77 : vector<1x128xf32> to vector<64x128xf32>
    %83 = arith.addf %81, %82 : vector<64x128xf32>
    %cst_34 = arith.constant 0.00999999977 : f32
    %84 = vector.broadcast %cst_34 : f32 to vector<64x128xf32>
    %85 = arith.mulf %84, %83 : vector<64x128xf32>
    %86 = arith.maximumf %83, %85 : vector<64x128xf32>
    %87 = vector.broadcast %5 : vector<64x1xf32> to vector<64x128xf32>
    %88 = arith.mulf %86, %87 : vector<64x128xf32>
    %cst_35 = arith.constant dense<0.000000e+00> : vector<128xf32>
    %89 = vector.multi_reduction <add>, %88, %cst_35 [0] : vector<64x128xf32> to vector<128xf32>
    %90 = vector.shape_cast %89 : vector<128xf32> to vector<1x128xf32>
    %91 = arith.mulf %88, %86 : vector<64x128xf32>
    %cst_36 = arith.constant dense<0.000000e+00> : vector<128xf32>
    %92 = vector.multi_reduction <add>, %91, %cst_36 [0] : vector<64x128xf32> to vector<128xf32>
    %93 = vector.shape_cast %92 : vector<128xf32> to vector<1x128xf32>
    %cst_37 = arith.constant 0.0166666675 : f32
    %94 = vector.broadcast %cst_37 : f32 to vector<1x128xf32>
    %95 = arith.mulf %90, %94 : vector<1x128xf32>
    %cst_38 = arith.constant 0.0166666675 : f32
    %96 = vector.broadcast %cst_38 : f32 to vector<1x128xf32>
    %97 = arith.mulf %93, %96 : vector<1x128xf32>
    %98 = arith.mulf %95, %95 : vector<1x128xf32>
    %99 = arith.subf %97, %98 : vector<1x128xf32>
    %cst_39 = arith.constant 9.99999974E-6 : f32
    %100 = vector.broadcast %cst_39 : f32 to vector<1x128xf32>
    %101 = arith.addf %99, %100 : vector<1x128xf32>
    %102 = math.rsqrt %101 : vector<1x128xf32>
    %103 = arith.mulf %78, %102 : vector<1x128xf32>
    %104 = vector.broadcast %103 : vector<1x128xf32> to vector<64x128xf32>
    %105 = arith.mulf %86, %104 : vector<64x128xf32>
    %106 = arith.mulf %95, %103 : vector<1x128xf32>
    %107 = arith.subf %79, %106 : vector<1x128xf32>
    %108 = vector.broadcast %107 : vector<1x128xf32> to vector<64x128xf32>
    %109 = arith.addf %105, %108 : vector<64x128xf32>
    %c3_40 = arith.constant 3 : index
    %c0_41 = arith.constant 0 : index
    %c0_42 = arith.constant 0 : index
    %110 = vector.load %arg1[%c3_40, %c0_41, %c0_42] : memref<6x128x128xbf16, #tpu.memory_space<vmem>>, vector<1x128x128xbf16>
    %111 = vector.shape_cast %110 : vector<1x128x128xbf16> to vector<128x128xbf16>
    %c9 = arith.constant 9 : index
    %c0_43 = arith.constant 0 : index
    %112 = vector.load %arg2[%c9, %c0_43] : memref<16x128xf32, #tpu.memory_space<vmem>>, vector<1x128xf32>
    %c10 = arith.constant 10 : index
    %c0_44 = arith.constant 0 : index
    %113 = vector.load %arg2[%c10, %c0_44] : memref<16x128xf32, #tpu.memory_space<vmem>>, vector<1x128xf32>
    %c11 = arith.constant 11 : index
    %c0_45 = arith.constant 0 : index
    %114 = vector.load %arg2[%c11, %c0_45] : memref<16x128xf32, #tpu.memory_space<vmem>>, vector<1x128xf32>
    %115 = arith.truncf %109 : vector<64x128xf32> to vector<64x128xbf16>
    %cst_46 = arith.constant dense<0.000000e+00> : vector<64x128xf32>
    %116 = tpu.matmul %115, %111, %cst_46 {dimension_numbers = #tpu.dot_dimension_numbers<[1], [0], [0], [1], [0, 0, 1, 1], [], []>} : vector<64x128xbf16>, vector<128x128xbf16>, vector<64x128xf32> -> vector<64x128xf32>
    %117 = vector.broadcast %112 : vector<1x128xf32> to vector<64x128xf32>
    %118 = arith.addf %116, %117 : vector<64x128xf32>
    %cst_47 = arith.constant 0.00999999977 : f32
    %119 = vector.broadcast %cst_47 : f32 to vector<64x128xf32>
    %120 = arith.mulf %119, %118 : vector<64x128xf32>
    %121 = arith.maximumf %118, %120 : vector<64x128xf32>
    %122 = vector.broadcast %5 : vector<64x1xf32> to vector<64x128xf32>
    %123 = arith.mulf %121, %122 : vector<64x128xf32>
    %cst_48 = arith.constant dense<0.000000e+00> : vector<128xf32>
    %124 = vector.multi_reduction <add>, %123, %cst_48 [0] : vector<64x128xf32> to vector<128xf32>
    %125 = vector.shape_cast %124 : vector<128xf32> to vector<1x128xf32>
    %126 = arith.mulf %123, %121 : vector<64x128xf32>
    %cst_49 = arith.constant dense<0.000000e+00> : vector<128xf32>
    %127 = vector.multi_reduction <add>, %126, %cst_49 [0] : vector<64x128xf32> to vector<128xf32>
    %128 = vector.shape_cast %127 : vector<128xf32> to vector<1x128xf32>
    %cst_50 = arith.constant 0.0166666675 : f32
    %129 = vector.broadcast %cst_50 : f32 to vector<1x128xf32>
    %130 = arith.mulf %125, %129 : vector<1x128xf32>
    %cst_51 = arith.constant 0.0166666675 : f32
    %131 = vector.broadcast %cst_51 : f32 to vector<1x128xf32>
    %132 = arith.mulf %128, %131 : vector<1x128xf32>
    %133 = arith.mulf %130, %130 : vector<1x128xf32>
    %134 = arith.subf %132, %133 : vector<1x128xf32>
    %cst_52 = arith.constant 9.99999974E-6 : f32
    %135 = vector.broadcast %cst_52 : f32 to vector<1x128xf32>
    %136 = arith.addf %134, %135 : vector<1x128xf32>
    %137 = math.rsqrt %136 : vector<1x128xf32>
    %138 = arith.mulf %113, %137 : vector<1x128xf32>
    %139 = vector.broadcast %138 : vector<1x128xf32> to vector<64x128xf32>
    %140 = arith.mulf %121, %139 : vector<64x128xf32>
    %141 = arith.mulf %130, %138 : vector<1x128xf32>
    %142 = arith.subf %114, %141 : vector<1x128xf32>
    %143 = vector.broadcast %142 : vector<1x128xf32> to vector<64x128xf32>
    %144 = arith.addf %140, %143 : vector<64x128xf32>
    %c4_53 = arith.constant 4 : index
    %c0_54 = arith.constant 0 : index
    %c0_55 = arith.constant 0 : index
    %145 = vector.load %arg1[%c4_53, %c0_54, %c0_55] : memref<6x128x128xbf16, #tpu.memory_space<vmem>>, vector<1x128x128xbf16>
    %146 = vector.shape_cast %145 : vector<1x128x128xbf16> to vector<128x128xbf16>
    %c12 = arith.constant 12 : index
    %c0_56 = arith.constant 0 : index
    %147 = vector.load %arg2[%c12, %c0_56] : memref<16x128xf32, #tpu.memory_space<vmem>>, vector<1x128xf32>
    %c13 = arith.constant 13 : index
    %c0_57 = arith.constant 0 : index
    %148 = vector.load %arg2[%c13, %c0_57] : memref<16x128xf32, #tpu.memory_space<vmem>>, vector<1x128xf32>
    %c14 = arith.constant 14 : index
    %c0_58 = arith.constant 0 : index
    %149 = vector.load %arg2[%c14, %c0_58] : memref<16x128xf32, #tpu.memory_space<vmem>>, vector<1x128xf32>
    %150 = arith.truncf %144 : vector<64x128xf32> to vector<64x128xbf16>
    %cst_59 = arith.constant dense<0.000000e+00> : vector<64x128xf32>
    %151 = tpu.matmul %150, %146, %cst_59 {dimension_numbers = #tpu.dot_dimension_numbers<[1], [0], [0], [1], [0, 0, 1, 1], [], []>} : vector<64x128xbf16>, vector<128x128xbf16>, vector<64x128xf32> -> vector<64x128xf32>
    %152 = vector.broadcast %147 : vector<1x128xf32> to vector<64x128xf32>
    %153 = arith.addf %151, %152 : vector<64x128xf32>
    %cst_60 = arith.constant 0.00999999977 : f32
    %154 = vector.broadcast %cst_60 : f32 to vector<64x128xf32>
    %155 = arith.mulf %154, %153 : vector<64x128xf32>
    %156 = arith.maximumf %153, %155 : vector<64x128xf32>
    %157 = vector.broadcast %5 : vector<64x1xf32> to vector<64x128xf32>
    %158 = arith.mulf %156, %157 : vector<64x128xf32>
    %cst_61 = arith.constant dense<0.000000e+00> : vector<128xf32>
    %159 = vector.multi_reduction <add>, %158, %cst_61 [0] : vector<64x128xf32> to vector<128xf32>
    %160 = vector.shape_cast %159 : vector<128xf32> to vector<1x128xf32>
    %161 = arith.mulf %158, %156 : vector<64x128xf32>
    %cst_62 = arith.constant dense<0.000000e+00> : vector<128xf32>
    %162 = vector.multi_reduction <add>, %161, %cst_62 [0] : vector<64x128xf32> to vector<128xf32>
    %163 = vector.shape_cast %162 : vector<128xf32> to vector<1x128xf32>
    %cst_63 = arith.constant 0.0166666675 : f32
    %164 = vector.broadcast %cst_63 : f32 to vector<1x128xf32>
    %165 = arith.mulf %160, %164 : vector<1x128xf32>
    %cst_64 = arith.constant 0.0166666675 : f32
    %166 = vector.broadcast %cst_64 : f32 to vector<1x128xf32>
    %167 = arith.mulf %163, %166 : vector<1x128xf32>
    %168 = arith.mulf %165, %165 : vector<1x128xf32>
    %169 = arith.subf %167, %168 : vector<1x128xf32>
    %cst_65 = arith.constant 9.99999974E-6 : f32
    %170 = vector.broadcast %cst_65 : f32 to vector<1x128xf32>
    %171 = arith.addf %169, %170 : vector<1x128xf32>
    %172 = math.rsqrt %171 : vector<1x128xf32>
    %173 = arith.mulf %148, %172 : vector<1x128xf32>
    %174 = vector.broadcast %173 : vector<1x128xf32> to vector<64x128xf32>
    %175 = arith.mulf %156, %174 : vector<64x128xf32>
    %176 = arith.mulf %165, %173 : vector<1x128xf32>
    %177 = arith.subf %149, %176 : vector<1x128xf32>
    %178 = vector.broadcast %177 : vector<1x128xf32> to vector<64x128xf32>
    %179 = arith.addf %175, %178 : vector<64x128xf32>
    %c5_66 = arith.constant 5 : index
    %c0_67 = arith.constant 0 : index
    %c0_68 = arith.constant 0 : index
    %180 = vector.load %arg1[%c5_66, %c0_67, %c0_68] : memref<6x128x128xbf16, #tpu.memory_space<vmem>>, vector<1x128x128xbf16>
    %181 = vector.shape_cast %180 : vector<1x128x128xbf16> to vector<128x128xbf16>
    %c15 = arith.constant 15 : index
    %c0_69 = arith.constant 0 : index
    %182 = vector.load %arg2[%c15, %c0_69] : memref<16x128xf32, #tpu.memory_space<vmem>>, vector<1x128xf32>
    %183 = arith.truncf %179 : vector<64x128xf32> to vector<64x128xbf16>
    %cst_70 = arith.constant dense<0.000000e+00> : vector<64x128xf32>
    %184 = tpu.matmul %183, %181, %cst_70 {dimension_numbers = #tpu.dot_dimension_numbers<[1], [0], [0], [1], [0, 0, 1, 1], [], []>} : vector<64x128xbf16>, vector<128x128xbf16>, vector<64x128xf32> -> vector<64x128xf32>
    %185 = vector.broadcast %182 : vector<1x128xf32> to vector<64x128xf32>
    %186 = arith.addf %184, %185 : vector<64x128xf32>
    %187 = tpu.iota {dimensions = array<i32: 1>} : vector<1x128xi32>
    %c10_i32 = arith.constant 10 : i32
    %188 = vector.broadcast %c10_i32 : i32 to vector<1x128xi32>
    %189 = arith.cmpi slt, %187, %188 : vector<1x128xi32>
    %cst_71 = arith.constant -1.000000e+30 : f32
    %190 = vector.shape_cast %189 : vector<1x128xi1> to vector<1x128xi1>
    %191 = vector.broadcast %190 : vector<1x128xi1> to vector<64x128xi1>
    %192 = vector.broadcast %cst_71 : f32 to vector<64x128xf32>
    %193 = arith.select %191, %186, %192 : vector<64x128xi1>, vector<64x128xf32>
    %cst_72 = arith.constant dense<0xFF800000> : vector<64xf32>
    %194 = vector.multi_reduction <maximumf>, %193, %cst_72 [1] : vector<64x128xf32> to vector<64xf32>
    %195 = vector.shape_cast %194 : vector<64xf32> to vector<64x1xf32>
    %196 = vector.broadcast %195 : vector<64x1xf32> to vector<64x128xf32>
    %197 = arith.subf %193, %196 : vector<64x128xf32>
    %198 = math.exp %197 : vector<64x128xf32>
    %cst_73 = arith.constant dense<0.000000e+00> : vector<64xf32>
    %199 = vector.multi_reduction <add>, %198, %cst_73 [1] : vector<64x128xf32> to vector<64xf32>
    %200 = vector.shape_cast %199 : vector<64xf32> to vector<64x1xf32>
    %201 = tpu.reciprocal %200 : vector<64x1xf32> -> vector<64x1xf32>
    %202 = vector.broadcast %201 : vector<64x1xf32> to vector<64x128xf32>
    %203 = arith.mulf %198, %202 : vector<64x128xf32>
    %c0_74 = arith.constant 0 : index
    %c0_75 = arith.constant 0 : index
    %204 = vector.load %arg3[%c0_74, %c0_75] : memref<64x128xf32, #tpu.memory_space<vmem>>, vector<64x128xf32>
    tpu.vector_store %arg3[%c0_74, %c0_75], %203 {strides = array<i32>} : memref<64x128xf32, #tpu.memory_space<vmem>>, vector<64x128xf32>,
    return
  }
}

</mosaic_0001>

<llo_original>
// kernel: tpu_custom_call.1
$region0: #{tpu_custom_call.1}
  #allocation0 [shape = 'u32[]', space=smem, size = 0x4, offset = 0x4, fixed_abs, tag = 'smem constant byte address 0x4 - core index']
  #allocation1 [shape = 'u32[144,128]{1,0:T(1,128)}', space=vmem, size = 0x12000, scoped, tag = 'internal scratch']
  %s0 = inlined_call_operand.hbm [shape: bf16[64,128], index: 0, kind: input, shape index: {}]
  %s1 = inlined_call_operand.hbm [shape: bf16[6,128,128], index: 1, kind: input, shape index: {}]
  %s2 = inlined_call_operand.hbm [shape: f32[16,128], index: 2, kind: input, shape index: {}]
  %s3 = inlined_call_operand.hbm [shape: f32[64,128], index: 3, kind: output, shape index: {}]
  %s4 = sld [smem:[#allocation0]]
  $region34: #{tpu_custom_call.1} parent=0
    _
  %s6 = ssub.s32 1, %s4
  %s7 = scalar_select 0, %s6, %s4
  $region1: #{tpu_custom_call.1} parent=0
    #allocation2 [shape = 'u8[16384]{0}', space=vmem, size = 0x4000, scoped, tag = 'input window, operand 0, single buffered']
    #allocation3 [shape = 's32[1]{0}', space=sflag, size = 0x4, scoped, tag = 'scoped memory for tpu_custom_call.1']
    #allocation4 [shape = 's32[1]{0}', space=sflag, size = 0x4, scoped, tag = 'scoped memory for tpu_custom_call.1']
    #allocation5 [shape = 'u8[196608]{0}', space=vmem, size = 0x30000, scoped, tag = 'input window, operand 1, single buffered']
    #allocation6 [shape = 's32[1]{0}', space=sflag, size = 0x4, scoped, tag = 'scoped memory for tpu_custom_call.1']
    #allocation7 [shape = 'u8[8192]{0}', space=vmem, size = 0x2000, scoped, tag = 'input window, operand 2, single buffered']
    #allocation8 [shape = 'u8[32768]{0}', space=vmem, size = 0x8000, scoped, tag = 'output window, operand 0, single buffered']
    %8 = vsyncpa [#allocation3], 0
    %9 = vsyncpa [#allocation6], 0
    %10 = vsyncpa [#allocation4], 0
    // Predicated region
    $region2: #{tpu_custom_call.1} parent=1 // pred_check
      _
    $region3: #{tpu_custom_call.1} parent=1 // pred_check_branch
      %12 = sbr.rel (0) target = $region5
    $region4: #{tpu_custom_call.1} parent=1 // pred_region
      %s14 = ssub.s32 512, 512
      %15 = vsyncadd [#allocation3], %s14
      %s16 = sshll.u32 [#allocation2], 4
      %s17 = int_to_ptr.vmem [resolvable:$true] %s16
      %22 = dma.hbm_to_vmem [thread:$0]  %s0, 512, %s17, [#allocation3], 64, 64, 4
    $region5: #{tpu_custom_call.1} parent=1 // pred_fallthru
      _
    // Predicated region
    $region6: #{tpu_custom_call.1} parent=1 // pred_check
      _
    $region7: #{tpu_custom_call.1} parent=1 // pred_check_branch
      %24 = sbr.rel (0) target = $region9
    $region8: #{tpu_custom_call.1} parent=1 // pred_region
      %s26 = ssub.s32 6144, 6144
      %27 = vsyncadd [#allocation6], %s26
      %s28 = sshll.u32 [#allocation5], 4
      %s29 = int_to_ptr.vmem [resolvable:$true] %s28
      %34 = dma.hbm_to_vmem [thread:$0]  %s1, 6144, %s29, [#allocation6], 64, 64, 4
    $region9: #{tpu_custom_call.1} parent=1 // pred_fallthru
      _
    // Predicated region
    $region10: #{tpu_custom_call.1} parent=1 // pred_check
      _
    $region11: #{tpu_custom_call.1} parent=1 // pred_check_branch
      %36 = sbr.rel (0) target = $region13
    $region12: #{tpu_custom_call.1} parent=1 // pred_region
      %s38 = ssub.s32 256, 256
      %39 = vsyncadd [#allocation6], %s38
      %s40 = sshll.u32 [#allocation7], 4
      %s41 = int_to_ptr.vmem [resolvable:$true] %s40
      %46 = dma.hbm_to_vmem [thread:$0]  %s2, 256, %s41, [#allocation6], 128, 128, 8
    $region13: #{tpu_custom_call.1} parent=1 // pred_fallthru
      _
    // Predicated region
    $region14: #{tpu_custom_call.1} parent=1 // pred_check
      _
    $region15: #{tpu_custom_call.1} parent=1 // pred_check_branch
      %48 = sbr.rel (0) target = $region17
    $region16: #{tpu_custom_call.1} parent=1 // pred_region
      %49 = dma.done [#allocation3], 512
    $region17: #{tpu_custom_call.1} parent=1 // pred_fallthru
      _
    // Predicated region
    $region18: #{tpu_custom_call.1} parent=1 // pred_check
      _
    $region19: #{tpu_custom_call.1} parent=1 // pred_check_branch
      %51 = sbr.rel (0) target = $region21
    $region20: #{tpu_custom_call.1} parent=1 // pred_region
      %52 = dma.done [#allocation6], 6144
    $region21: #{tpu_custom_call.1} parent=1 // pred_fallthru
      _
    // Predicated region
    $region22: #{tpu_custom_call.1} parent=1 // pred_check
      _
    $region23: #{tpu_custom_call.1} parent=1 // pred_check_branch
      %54 = sbr.rel (0) target = $region25
    $region24: #{tpu_custom_call.1} parent=1 // pred_region
      %55 = dma.done [#allocation6], 256
    $region25: #{tpu_custom_call.1} parent=1 // pred_fallthru
      _
    %v57 = vld [vmem:[#allocation2] sm:$0xf]
    %v58 = vld [vmem:[#allocation2 + $0x4] sm:$0xf]
    %v59 = vld [vmem:[#allocation2 + $0x8] sm:$0xf]
    %v60 = vld [vmem:[#allocation2 + $0xc] sm:$0xf]
    %v61 = vld [vmem:[#allocation2 + $0x10] sm:$0xf]
    %v62 = vld [vmem:[#allocation2 + $0x14] sm:$0xf]
    %v63 = vld [vmem:[#allocation2 + $0x18] sm:$0xf]
    %v64 = vld [vmem:[#allocation2 + $0x1c] sm:$0xf]
    %v65 = vlaneseq
    %v66 = vshrl.u32 %v65, 7
    %v67 = vadd.s32 %v66, 8
    %v68 = vadd.s32 %v66, 16
    %v69 = vadd.s32 %v66, 24
    %v70 = vadd.s32 %v66, 32
    %v71 = vadd.s32 %v66, 40
    %v72 = vadd.s32 %v66, 48
    %v73 = vadd.s32 %v66, 56
    %vm74 = vcmp.lt.s32.totalorder %v66, 60
    %vm75 = vcmp.lt.s32.totalorder %v67, 60
    %vm76 = vcmp.lt.s32.totalorder %v68, 60
    %vm77 = vcmp.lt.s32.totalorder %v69, 60
    %vm78 = vcmp.lt.s32.totalorder %v70, 60
    %vm79 = vcmp.lt.s32.totalorder %v71, 60
    %vm80 = vcmp.lt.s32.totalorder %v72, 60
    %vm81 = vcmp.lt.s32.totalorder %v73, 60
    %v82 = vsel %vm74, 1, 0
    %v83 = vsel %vm75, 1, 0
    %v84 = vsel %vm76, 1, 0
    %v85 = vsel %vm77, 1, 0
    %v86 = vsel %vm78, 1, 0
    %v87 = vsel %vm79, 1, 0
    %v88 = vsel %vm80, 1, 0
    %v89 = vsel %vm81, 1, 0
    %v90 = vcvt.s32.f32 %v82
    %v91 = vcvt.s32.f32 %v83
    %v92 = vcvt.s32.f32 %v84
    %v93 = vcvt.s32.f32 %v85
    %v94 = vcvt.s32.f32 %v86
    %v95 = vcvt.s32.f32 %v87
    %v96 = vcvt.s32.f32 %v88
    %v97 = vcvt.s32.f32 %v89
    %v98 = vld [vmem:[#allocation5] sm:$0xf]
    %v99 = vld [vmem:[#allocation5 + $0x4] sm:$0xf]
    %v100 = vld [vmem:[#allocation5 + $0x8] sm:$0xf]
    %v101 = vld [vmem:[#allocation5 + $0xc] sm:$0xf]
    %v102 = vld [vmem:[#allocation5 + $0x10] sm:$0xf]
    %v103 = vld [vmem:[#allocation5 + $0x14] sm:$0xf]
    %v104 = vld [vmem:[#allocation5 + $0x18] sm:$0xf]
    %v105 = vld [vmem:[#allocation5 + $0x1c] sm:$0xf]
    %v106 = vld [vmem:[#allocation5 + $0x20] sm:$0xf]
    %v107 = vld [vmem:[#allocation5 + $0x24] sm:$0xf]
    %v108 = vld [vmem:[#allocation5 + $0x28] sm:$0xf]
    %v109 = vld [vmem:[#allocation5 + $0x2c] sm:$0xf]
    %v110 = vld [vmem:[#allocation5 + $0x30] sm:$0xf]
    %v111 = vld [vmem:[#allocation5 + $0x34] sm:$0xf]
    %v112 = vld [vmem:[#allocation5 + $0x38] sm:$0xf]
    %v113 = vld [vmem:[#allocation5 + $0x3c] sm:$0xf]
    %v114 = vld [vmem:[#allocation7] sm:$0x1]
    %v115 = vld [vmem:[#allocation7 + $0x1] sm:$0x1]
    %v116 = vld [vmem:[#allocation7 + $0x2] sm:$0x1]
    %v117 = vlaneseq
    %v118 = vshrl.u32 %v117, 7
    %v119 = vsub.s32 0, %v118
    %v120 = vrot.slane %v114, %v119
    %v129 = vunpack.c.l.b16 %v57
    %v130 = vunpack.c.l.b16 %v58
    %v131 = vunpack.c.l.b16 %v59
    %v132 = vunpack.c.l.b16 %v60
    %v133 = vunpack.c.l.b16 %v61
    %v134 = vunpack.c.l.b16 %v62
    %v135 = vunpack.c.l.b16 %v63
    %v136 = vunpack.c.l.b16 %v64
    %v137 = vpack.c.b16 %v130, %v129
    %v138 = vpack.c.b16 %v132, %v131
    %v139 = vpack.c.b16 %v134, %v133
    %v140 = vpack.c.b16 %v136, %v135
    %v161 = vunpack.c.l.b16 %v98
    %v162 = vunpack.c.l.b16 %v99
    %v163 = vunpack.c.l.b16 %v100
    %v164 = vunpack.c.l.b16 %v101
    %v165 = vunpack.c.l.b16 %v102
    %v166 = vunpack.c.l.b16 %v103
    %v167 = vunpack.c.l.b16 %v104
    %v168 = vunpack.c.l.b16 %v105
    %v169 = vunpack.c.l.b16 %v106
    %v170 = vunpack.c.l.b16 %v107
    %v171 = vunpack.c.l.b16 %v108
    %v172 = vunpack.c.l.b16 %v109
    %v173 = vunpack.c.l.b16 %v110
    %v174 = vunpack.c.l.b16 %v111
    %v175 = vunpack.c.l.b16 %v112
    %v176 = vunpack.c.l.b16 %v113
    %v177 = vpack.c.b16 %v162, %v161
    %v178 = vpack.c.b16 %v164, %v163
    %v179 = vpack.c.b16 %v166, %v165
    %v180 = vpack.c.b16 %v168, %v167
    %v181 = vpack.c.b16 %v170, %v169
    %v182 = vpack.c.b16 %v172, %v171
    %v183 = vpack.c.b16 %v174, %v173
    %v184 = vpack.c.b16 %v176, %v175
    %193 = vmatprep.subr.bf16.mxu0 0
    %194 = vmatpush1.bf16.msra.mxu0 %v177
    %195 = vmatprep.subr.bf16.mxu0 0
    %196 = vmatpush1.bf16.msra.mxu0 %v178
    %197 = vmatprep.subr.bf16.mxu0 0
    %198 = vmatpush1.bf16.msra.mxu0 %v179
    %199 = vmatprep.subr.bf16.mxu0 0
    %200 = vmatpush1.bf16.msra.mxu0 %v180
    %201 = vmatprep.subr.bf16.mxu0 0
    %202 = vmatpush1.bf16.msra.mxu0 %v181
    %203 = vmatprep.subr.bf16.mxu0 0
    %204 = vmatpush1.bf16.msra.mxu0 %v182
    %205 = vmatprep.subr.bf16.mxu0 0
    %206 = vmatpush1.bf16.msra.mxu0 %v183
    %207 = vmatprep.subr.bf16.mxu0 0
    %208 = vmatpush1.bf16.msra.mxu0 %v184
    %209 = vmatprep.subr.bf16.mxu0 0
    %210 = vmatpush1.bf16.msra.mxu0 0
    %211 = vmatprep.subr.bf16.mxu0 0
    %212 = vmatpush1.bf16.msra.mxu0 0
    %213 = vmatprep.subr.bf16.mxu0 0
    %214 = vmatpush1.bf16.msra.mxu0 0
    %215 = vmatprep.subr.bf16.mxu0 0
    %216 = vmatpush1.bf16.msra.mxu0 0
    %217 = vmatprep.subr.bf16.mxu0 0
    %218 = vmatpush1.bf16.msra.mxu0 0
    %219 = vmatprep.subr.bf16.mxu0 0
    %220 = vmatpush1.bf16.msra.mxu0 0
    %221 = vmatprep.subr.bf16.mxu0 0
    %222 = vmatpush1.bf16.msra.mxu0 0
    %223 = vmatprep.subr.bf16.mxu0 0
    %224 = vmatpush1.bf16.msra.mxu0 0
    %225 = vmatprep.mubr.bf16.mxu0 0
    %226 = vmatmul.mubr.bf16.gmra.mrb[0].mxu0 %v137
    %v227 = vpop.f32.mrb[0].mxu0
    %v228 = vadd.f32 %v120, %v227
    %v229 = vpop.f32.mrb[0].mxu0
    %v230 = vpop.f32.mrb[0].mxu0
    %v231 = vadd.f32 %v120, %v230
    %v232 = vpop.f32.mrb[0].mxu0
    %233 = vmatprep.mubr.bf16.mxu0 0
    %234 = vmatmul.mubr.bf16.gmra.mrb[0].mxu0 %v138
    %v235 = vpop.f32.mrb[0].mxu0
    %v236 = vadd.f32 %v120, %v235
    %v237 = vpop.f32.mrb[0].mxu0
    %v238 = vpop.f32.mrb[0].mxu0
    %v239 = vadd.f32 %v120, %v238
    %v240 = vpop.f32.mrb[0].mxu0
    %241 = vmatprep.mubr.bf16.mxu0 0
    %242 = vmatmul.mubr.bf16.gmra.mrb[0].mxu0 %v139
    %v243 = vpop.f32.mrb[0].mxu0
    %v244 = vadd.f32 %v120, %v243
    %v245 = vpop.f32.mrb[0].mxu0
    %v246 = vpop.f32.mrb[0].mxu0
    %v247 = vadd.f32 %v120, %v246
    %v248 = vpop.f32.mrb[0].mxu0
    %249 = vmatprep.mubr.bf16.mxu0 0
    %250 = vmatmul.mubr.bf16.gmra.mrb[0].mxu0 %v140
    %v251 = vpop.f32.mrb[0].mxu0
    %v252 = vadd.f32 %v120, %v251
    %v253 = vpop.f32.mrb[0].mxu0
    %v254 = vpop.f32.mrb[0].mxu0
    %v255 = vadd.f32 %v120, %v254
    %v256 = vpop.f32.mrb[0].mxu0
    %257 = vdwg.mxu0
    %v258 = vmul.f32 %v228, 0.01
    %v259 = vmul.f32 %v231, 0.01
    %v260 = vmul.f32 %v236, 0.01
    %v261 = vmul.f32 %v239, 0.01
    %v262 = vmul.f32 %v244, 0.01
    %v263 = vmul.f32 %v247, 0.01
    %v264 = vmul.f32 %v252, 0.01
    %v265 = vmul.f32 %v255, 0.01
    %v266 = vmax.f32 %v228, %v258
    %v267 = vmax.f32 %v231, %v259
    %v268 = vmax.f32 %v236, %v260
    %v269 = vmax.f32 %v239, %v261
    %v270 = vmax.f32 %v244, %v262
    %v271 = vmax.f32 %v247, %v263
    %v272 = vmax.f32 %v252, %v264
    %v273 = vmax.f32 %v255, %v265
    %v274 = vmul.f32 %v266, %v90
    %v275 = vmul.f32 %v267, %v91
    %v276 = vmul.f32 %v268, %v92
    %v277 = vmul.f32 %v269, %v93
    %v278 = vmul.f32 %v270, %v94
    %v279 = vmul.f32 %v271, %v95
    %v280 = vmul.f32 %v272, %v96
    %v281 = vmul.f32 %v273, %v97
    %v282 = vadd.f32 %v274, %v275
    %v283 = vadd.f32 %v282, %v276
    %v284 = vadd.f32 %v283, %v277
    %v285 = vadd.f32 %v284, %v278
    %v286 = vadd.f32 %v285, %v279
    %v287 = vadd.f32 %v286, %v280
    %v288 = vadd.f32 %v287, %v281
    %v289 = vrot.slane %v288, 4
    %v290 = vadd.f32 %v288, %v289
    %v291 = vrot.slane %v290, 2
    %v292 = vadd.f32 %v290, %v291
    %v293 = vrot.slane %v292, 1
    %v294 = vadd.f32 %v292, %v293
    %v295 = vmul.f32 %v274, %v266
    %v296 = vmul.f32 %v275, %v267
    %v297 = vmul.f32 %v276, %v268
    %v298 = vmul.f32 %v277, %v269
    %v299 = vmul.f32 %v278, %v270
    %v300 = vmul.f32 %v279, %v271
    %v301 = vmul.f32 %v280, %v272
    %v302 = vmul.f32 %v281, %v273
    %v303 = vadd.f32 %v295, %v296
    %v304 = vadd.f32 %v303, %v297
    %v305 = vadd.f32 %v304, %v298
    %v306 = vadd.f32 %v305, %v299
    %v307 = vadd.f32 %v306, %v300
    %v308 = vadd.f32 %v307, %v301
    %v309 = vadd.f32 %v308, %v302
    %v310 = vrot.slane %v309, 4
    %v311 = vadd.f32 %v309, %v310
    %v312 = vrot.slane %v311, 2
    %v313 = vadd.f32 %v311, %v312
    %v314 = vrot.slane %v313, 1
    %v315 = vadd.f32 %v313, %v314
    %v316 = vmul.f32 %v294, 0.016666668
    %v317 = vmul.f32 %v315, 0.016666668
    %v318 = vmul.f32 %v316, %v316
    %v319 = vsub.f32 %v317, %v318
    %v320 = vadd.f32 %v319, 1e-05
    %v321 = vrsqrt.pop %v320
    %v322 = vmul.f32 %v115, %v321
    %v323 = vlaneseq
    %v324 = vshrl.u32 %v323, 7
    %v325 = vsub.s32 0, %v324
    %v326 = vrot.slane %v322, %v325
    %v327 = vmul.f32 %v266, %v326
    %v328 = vmul.f32 %v267, %v326
    %v329 = vmul.f32 %v268, %v326
    %v330 = vmul.f32 %v269, %v326
    %v331 = vmul.f32 %v270, %v326
    %v332 = vmul.f32 %v271, %v326
    %v333 = vmul.f32 %v272, %v326
    %v334 = vmul.f32 %v273, %v326
    %v335 = vmul.f32 %v316, %v322
    %v336 = vsub.f32 %v116, %v335
    %v337 = vlaneseq
    %v338 = vshrl.u32 %v337, 7
    %v339 = vsub.s32 0, %v338
    %v340 = vrot.slane %v336, %v339
    %v341 = vadd.f32 %v327, %v340
    %v342 = vadd.f32 %v328, %v340
    %v343 = vadd.f32 %v329, %v340
    %v344 = vadd.f32 %v330, %v340
    %v345 = vadd.f32 %v331, %v340
    %v346 = vadd.f32 %v332, %v340
    %v347 = vadd.f32 %v333, %v340
    %v348 = vadd.f32 %v334, %v340
    %s349 = scalar_lea.vmem [#allocation5], 64
    %v350 = vld [vmem:[%s349] sm:$0xf]
    %v351 = vld [vmem:[%s349 + $0x4] sm:$0xf]
    %v352 = vld [vmem:[%s349 + $0x8] sm:$0xf]
    %v353 = vld [vmem:[%s349 + $0xc] sm:$0xf]
    %v354 = vld [vmem:[%s349 + $0x10] sm:$0xf]
    %v355 = vld [vmem:[%s349 + $0x14] sm:$0xf]
    %v356 = vld [vmem:[%s349 + $0x18] sm:$0xf]
    %v357 = vld [vmem:[%s349 + $0x1c] sm:$0xf]
    %v358 = vld [vmem:[%s349 + $0x20] sm:$0xf]
    %v359 = vld [vmem:[%s349 + $0x24] sm:$0xf]
    %v360 = vld [vmem:[%s349 + $0x28] sm:$0xf]
    %v361 = vld [vmem:[%s349 + $0x2c] sm:$0xf]
    %v362 = vld [vmem:[%s349 + $0x30] sm:$0xf]
    %v363 = vld [vmem:[%s349 + $0x34] sm:$0xf]
    %v364 = vld [vmem:[%s349 + $0x38] sm:$0xf]
    %v365 = vld [vmem:[%s349 + $0x3c] sm:$0xf]
    %v366 = vld [vmem:[#allocation7 + $0x3] sm:$0x1]
    %v367 = vld [vmem:[#allocation7 + $0x4] sm:$0x1]
    %v368 = vld [vmem:[#allocation7 + $0x5] sm:$0x1]
    %v369 = vpack.c.bf16 %v342, %v341
    %v370 = vpack.c.bf16 %v344, %v343
    %v371 = vpack.c.bf16 %v346, %v345
    %v372 = vpack.c.bf16 %v348, %v347
    %v373 = vlaneseq
    %v374 = vshrl.u32 %v373, 7
    %v375 = vsub.s32 0, %v374
    %v376 = vrot.slane %v366, %v375
    %v393 = vunpack.c.l.b16 %v350
    %v394 = vunpack.c.l.b16 %v351
    %v395 = vunpack.c.l.b16 %v352
    %v396 = vunpack.c.l.b16 %v353
    %v397 = vunpack.c.l.b16 %v354
    %v398 = vunpack.c.l.b16 %v355
    %v399 = vunpack.c.l.b16 %v356
    %v400 = vunpack.c.l.b16 %v357
    %v401 = vunpack.c.l.b16 %v358
    %v402 = vunpack.c.l.b16 %v359
    %v403 = vunpack.c.l.b16 %v360
    %v404 = vunpack.c.l.b16 %v361
    %v405 = vunpack.c.l.b16 %v362
    %v406 = vunpack.c.l.b16 %v363
    %v407 = vunpack.c.l.b16 %v364
    %v408 = vunpack.c.l.b16 %v365
    %v409 = vpack.c.b16 %v394, %v393
    %v410 = vpack.c.b16 %v396, %v395
    %v411 = vpack.c.b16 %v398, %v397
    %v412 = vpack.c.b16 %v400, %v399
    %v413 = vpack.c.b16 %v402, %v401
    %v414 = vpack.c.b16 %v404, %v403
    %v415 = vpack.c.b16 %v406, %v405
    %v416 = vpack.c.b16 %v408, %v407
    %425 = vmatprep.subr.bf16.mxu0 0
    %426 = vmatpush1.bf16.msra.mxu0 %v409
    %427 = vmatprep.subr.bf16.mxu0 0
    %428 = vmatpush1.bf16.msra.mxu0 %v410
    %429 = vmatprep.subr.bf16.mxu0 0
    %430 = vmatpush1.bf16.msra.mxu0 %v411
    %431 = vmatprep.subr.bf16.mxu0 0
    %432 = vmatpush1.bf16.msra.mxu0 %v412
    %433 = vmatprep.subr.bf16.mxu0 0
    %434 = vmatpush1.bf16.msra.mxu0 %v413
    %435 = vmatprep.subr.bf16.mxu0 0
    %436 = vmatpush1.bf16.msra.mxu0 %v414
    %437 = vmatprep.subr.bf16.mxu0 0
    %438 = vmatpush1.bf16.msra.mxu0 %v415
    %439 = vmatprep.subr.bf16.mxu0 0
    %440 = vmatpush1.bf16.msra.mxu0 %v416
    %441 = vmatprep.subr.bf16.mxu0 0
    %442 = vmatpush1.bf16.msra.mxu0 0
    %443 = vmatprep.subr.bf16.mxu0 0
    %444 = vmatpush1.bf16.msra.mxu0 0
    %445 = vmatprep.subr.bf16.mxu0 0
    %446 = vmatpush1.bf16.msra.mxu0 0
    %447 = vmatprep.subr.bf16.mxu0 0
    %448 = vmatpush1.bf16.msra.mxu0 0
    %449 = vmatprep.subr.bf16.mxu0 0
    %450 = vmatpush1.bf16.msra.mxu0 0
    %451 = vmatprep.subr.bf16.mxu0 0
    %452 = vmatpush1.bf16.msra.mxu0 0
    %453 = vmatprep.subr.bf16.mxu0 0
    %454 = vmatpush1.bf16.msra.mxu0 0
    %455 = vmatprep.subr.bf16.mxu0 0
    %456 = vmatpush1.bf16.msra.mxu0 0
    %457 = vmatprep.mubr.bf16.mxu0 0
    %458 = vmatmul.mubr.bf16.gmra.mrb[0].mxu0 %v369
    %v459 = vpop.f32.mrb[0].mxu0
    %v460 = vadd.f32 %v376, %v459
    %v461 = vpop.f32.mrb[0].mxu0
    %v462 = vpop.f32.mrb[0].mxu0
    %v463 = vadd.f32 %v376, %v462
    %v464 = vpop.f32.mrb[0].mxu0
    %465 = vmatprep.mubr.bf16.mxu0 0
    %466 = vmatmul.mubr.bf16.gmra.mrb[0].mxu0 %v370
    %v467 = vpop.f32.mrb[0].mxu0
    %v468 = vadd.f32 %v376, %v467
    %v469 = vpop.f32.mrb[0].mxu0
    %v470 = vpop.f32.mrb[0].mxu0
    %v471 = vadd.f32 %v376, %v470
    %v472 = vpop.f32.mrb[0].mxu0
    %473 = vmatprep.mubr.bf16.mxu0 0
    %474 = vmatmul.mubr.bf16.gmra.mrb[0].mxu0 %v371
    %v475 = vpop.f32.mrb[0].mxu0
    %v476 = vadd.f32 %v376, %v475
    %v477 = vpop.f32.mrb[0].mxu0
    %v478 = vpop.f32.mrb[0].mxu0
    %v479 = vadd.f32 %v376, %v478
    %v480 = vpop.f32.mrb[0].mxu0
    %481 = vmatprep.mubr.bf16.mxu0 0
    %482 = vmatmul.mubr.bf16.gmra.mrb[0].mxu0 %v372
    %v483 = vpop.f32.mrb[0].mxu0
    %v484 = vadd.f32 %v376, %v483
    %v485 = vpop.f32.mrb[0].mxu0
    %v486 = vpop.f32.mrb[0].mxu0
    %v487 = vadd.f32 %v376, %v486
    %v488 = vpop.f32.mrb[0].mxu0
    %489 = vdwg.mxu0
    %v490 = vmul.f32 %v460, 0.01
    %v491 = vmul.f32 %v463, 0.01
    %v492 = vmul.f32 %v468, 0.01
    %v493 = vmul.f32 %v471, 0.01
    %v494 = vmul.f32 %v476, 0.01
    %v495 = vmul.f32 %v479, 0.01
    %v496 = vmul.f32 %v484, 0.01
    %v497 = vmul.f32 %v487, 0.01
    %v498 = vmax.f32 %v460, %v490
    %v499 = vmax.f32 %v463, %v491
    %v500 = vmax.f32 %v468, %v492
    %v501 = vmax.f32 %v471, %v493
    %v502 = vmax.f32 %v476, %v494
    %v503 = vmax.f32 %v479, %v495
    %v504 = vmax.f32 %v484, %v496
    %v505 = vmax.f32 %v487, %v497
    %v506 = vmul.f32 %v498, %v90
    %v507 = vmul.f32 %v499, %v91
    %v508 = vmul.f32 %v500, %v92
    %v509 = vmul.f32 %v501, %v93
    %v510 = vmul.f32 %v502, %v94
    %v511 = vmul.f32 %v503, %v95
    %v512 = vmul.f32 %v504, %v96
    %v513 = vmul.f32 %v505, %v97
    %v514 = vadd.f32 %v506, %v507
    %v515 = vadd.f32 %v514, %v508
    %v516 = vadd.f32 %v515, %v509
    %v517 = vadd.f32 %v516, %v510
    %v518 = vadd.f32 %v517, %v511
    %v519 = vadd.f32 %v518, %v512
    %v520 = vadd.f32 %v519, %v513
    %v521 = vrot.slane %v520, 4
    %v522 = vadd.f32 %v520, %v521
    %v523 = vrot.slane %v522, 2
    %v524 = vadd.f32 %v522, %v523
    %v525 = vrot.slane %v524, 1
    %v526 = vadd.f32 %v524, %v525
    %v527 = vmul.f32 %v506, %v498
    %v528 = vmul.f32 %v507, %v499
    %v529 = vmul.f32 %v508, %v500
    %v530 = vmul.f32 %v509, %v501
    %v531 = vmul.f32 %v510, %v502
    %v532 = vmul.f32 %v511, %v503
    %v533 = vmul.f32 %v512, %v504
    %v534 = vmul.f32 %v513, %v505
    %v535 = vadd.f32 %v527, %v528
    %v536 = vadd.f32 %v535, %v529
    %v537 = vadd.f32 %v536, %v530
    %v538 = vadd.f32 %v537, %v531
    %v539 = vadd.f32 %v538, %v532
    %v540 = vadd.f32 %v539, %v533
    %v541 = vadd.f32 %v540, %v534
    %v542 = vrot.slane %v541, 4
    %v543 = vadd.f32 %v541, %v542
    %v544 = vrot.slane %v543, 2
    %v545 = vadd.f32 %v543, %v544
    %v546 = vrot.slane %v545, 1
    %v547 = vadd.f32 %v545, %v546
    %v548 = vmul.f32 %v526, 0.016666668
    %v549 = vmul.f32 %v547, 0.016666668
    %v550 = vmul.f32 %v548, %v548
    %v551 = vsub.f32 %v549, %v550
    %v552 = vadd.f32 %v551, 1e-05
    %v553 = vrsqrt.pop %v552
    %v554 = vmul.f32 %v367, %v553
    %v555 = vlaneseq
    %v556 = vshrl.u32 %v555, 7
    %v557 = vsub.s32 0, %v556
    %v558 = vrot.slane %v554, %v557
    %v559 = vmul.f32 %v498, %v558
    %v560 = vmul.f32 %v499, %v558
    %v561 = vmul.f32 %v500, %v558
    %v562 = vmul.f32 %v501, %v558
    %v563 = vmul.f32 %v502, %v558
    %v564 = vmul.f32 %v503, %v558
    %v565 = vmul.f32 %v504, %v558
    %v566 = vmul.f32 %v505, %v558
    %v567 = vmul.f32 %v548, %v554
    %v568 = vsub.f32 %v368, %v567
    %v569 = vlaneseq
    %v570 = vshrl.u32 %v569, 7
    %v571 = vsub.s32 0, %v570
    %v572 = vrot.slane %v568, %v571
    %v573 = vadd.f32 %v559, %v572
    %v574 = vadd.f32 %v560, %v572
    %v575 = vadd.f32 %v561, %v572
    %v576 = vadd.f32 %v562, %v572
    %v577 = vadd.f32 %v563, %v572
    %v578 = vadd.f32 %v564, %v572
    %v579 = vadd.f32 %v565, %v572
    %v580 = vadd.f32 %v566, %v572
    %s581 = scalar_lea.vmem [#allocation5], 128
    %v582 = vld [vmem:[%s581] sm:$0xf]
    %v583 = vld [vmem:[%s581 + $0x4] sm:$0xf]
    %v584 = vld [vmem:[%s581 + $0x8] sm:$0xf]
    %v585 = vld [vmem:[%s581 + $0xc] sm:$0xf]
    %v586 = vld [vmem:[%s581 + $0x10] sm:$0xf]
    %v587 = vld [vmem:[%s581 + $0x14] sm:$0xf]
    %v588 = vld [vmem:[%s581 + $0x18] sm:$0xf]
    %v589 = vld [vmem:[%s581 + $0x1c] sm:$0xf]
    %v590 = vld [vmem:[%s581 + $0x20] sm:$0xf]
    %v591 = vld [vmem:[%s581 + $0x24] sm:$0xf]
    %v592 = vld [vmem:[%s581 + $0x28] sm:$0xf]
    %v593 = vld [vmem:[%s581 + $0x2c] sm:$0xf]
    %v594 = vld [vmem:[%s581 + $0x30] sm:$0xf]
    %v595 = vld [vmem:[%s581 + $0x34] sm:$0xf]
    %v596 = vld [vmem:[%s581 + $0x38] sm:$0xf]
    %v597 = vld [vmem:[%s581 + $0x3c] sm:$0xf]
    %v598 = vld [vmem:[#allocation7 + $0x6] sm:$0x1]
    %v599 = vld [vmem:[#allocation7 + $0x7] sm:$0x1]
    %v600 = vld [vmem:[#allocation7 + $0x8] sm:$0x1]
    %v601 = vpack.c.bf16 %v574, %v573
    %v602 = vpack.c.bf16 %v576, %v575
    %v603 = vpack.c.bf16 %v578, %v577
    %v604 = vpack.c.bf16 %v580, %v579
    %v605 = vlaneseq
    %v606 = vshrl.u32 %v605, 7
    %v607 = vsub.s32 0, %v606
    %v608 = vrot.slane %v598, %v607
    %v625 = vunpack.c.l.b16 %v582
    %v626 = vunpack.c.l.b16 %v583
    %v627 = vunpack.c.l.b16 %v584
    %v628 = vunpack.c.l.b16 %v585
    %v629 = vunpack.c.l.b16 %v586
    %v630 = vunpack.c.l.b16 %v587
    %v631 = vunpack.c.l.b16 %v588
    %v632 = vunpack.c.l.b16 %v589
    %v633 = vunpack.c.l.b16 %v590
    %v634 = vunpack.c.l.b16 %v591
    %v635 = vunpack.c.l.b16 %v592
    %v636 = vunpack.c.l.b16 %v593
    %v637 = vunpack.c.l.b16 %v594
    %v638 = vunpack.c.l.b16 %v595
    %v639 = vunpack.c.l.b16 %v596
    %v640 = vunpack.c.l.b16 %v597
    %v641 = vpack.c.b16 %v626, %v625
    %v642 = vpack.c.b16 %v628, %v627
    %v643 = vpack.c.b16 %v630, %v629
    %v644 = vpack.c.b16 %v632, %v631
    %v645 = vpack.c.b16 %v634, %v633
    %v646 = vpack.c.b16 %v636, %v635
    %v647 = vpack.c.b16 %v638, %v637
    %v648 = vpack.c.b16 %v640, %v639
    %657 = vmatprep.subr.bf16.mxu0 0
    %658 = vmatpush1.bf16.msra.mxu0 %v641
    %659 = vmatprep.subr.bf16.mxu0 0
    %660 = vmatpush1.bf16.msra.mxu0 %v642
    %661 = vmatprep.subr.bf16.mxu0 0
    %662 = vmatpush1.bf16.msra.mxu0 %v643
    %663 = vmatprep.subr.bf16.mxu0 0
    %664 = vmatpush1.bf16.msra.mxu0 %v644
    %665 = vmatprep.subr.bf16.mxu0 0
    %666 = vmatpush1.bf16.msra.mxu0 %v645
    %667 = vmatprep.subr.bf16.mxu0 0
    %668 = vmatpush1.bf16.msra.mxu0 %v646
    %669 = vmatprep.subr.bf16.mxu0 0
    %670 = vmatpush1.bf16.msra.mxu0 %v647
    %671 = vmatprep.subr.bf16.mxu0 0
    %672 = vmatpush1.bf16.msra.mxu0 %v648
    %673 = vmatprep.subr.bf16.mxu0 0
    %674 = vmatpush1.bf16.msra.mxu0 0
    %675 = vmatprep.subr.bf16.mxu0 0
    %676 = vmatpush1.bf16.msra.mxu0 0
    %677 = vmatprep.subr.bf16.mxu0 0
    %678 = vmatpush1.bf16.msra.mxu0 0
    %679 = vmatprep.subr.bf16.mxu0 0
    %680 = vmatpush1.bf16.msra.mxu0 0
    %681 = vmatprep.subr.bf16.mxu0 0
    %682 = vmatpush1.bf16.msra.mxu0 0
    %683 = vmatprep.subr.bf16.mxu0 0
    %684 = vmatpush1.bf16.msra.mxu0 0
    %685 = vmatprep.subr.bf16.mxu0 0
    %686 = vmatpush1.bf16.msra.mxu0 0
    %687 = vmatprep.subr.bf16.mxu0 0
    %688 = vmatpush1.bf16.msra.mxu0 0
    %689 = vmatprep.mubr.bf16.mxu0 0
    %690 = vmatmul.mubr.bf16.gmra.mrb[0].mxu0 %v601
    %v691 = vpop.f32.mrb[0].mxu0
    %v692 = vadd.f32 %v608, %v691
    %v693 = vpop.f32.mrb[0].mxu0
    %v694 = vpop.f32.mrb[0].mxu0
    %v695 = vadd.f32 %v608, %v694
    %v696 = vpop.f32.mrb[0].mxu0
    %697 = vmatprep.mubr.bf16.mxu0 0
    %698 = vmatmul.mubr.bf16.gmra.mrb[0].mxu0 %v602
    %v699 = vpop.f32.mrb[0].mxu0
    %v700 = vadd.f32 %v608, %v699
    %v701 = vpop.f32.mrb[0].mxu0
    %v702 = vpop.f32.mrb[0].mxu0
    %v703 = vadd.f32 %v608, %v702
    %v704 = vpop.f32.mrb[0].mxu0
    %705 = vmatprep.mubr.bf16.mxu0 0
    %706 = vmatmul.mubr.bf16.gmra.mrb[0].mxu0 %v603
    %v707 = vpop.f32.mrb[0].mxu0
    %v708 = vadd.f32 %v608, %v707
    %v709 = vpop.f32.mrb[0].mxu0
    %v710 = vpop.f32.mrb[0].mxu0
    %v711 = vadd.f32 %v608, %v710
    %v712 = vpop.f32.mrb[0].mxu0
    %713 = vmatprep.mubr.bf16.mxu0 0
    %714 = vmatmul.mubr.bf16.gmra.mrb[0].mxu0 %v604
    %v715 = vpop.f32.mrb[0].mxu0
    %v716 = vadd.f32 %v608, %v715
    %v717 = vpop.f32.mrb[0].mxu0
    %v718 = vpop.f32.mrb[0].mxu0
    %v719 = vadd.f32 %v608, %v718
    %v720 = vpop.f32.mrb[0].mxu0
    %721 = vdwg.mxu0
    %v722 = vmul.f32 %v692, 0.01
    %v723 = vmul.f32 %v695, 0.01
    %v724 = vmul.f32 %v700, 0.01
    %v725 = vmul.f32 %v703, 0.01
    %v726 = vmul.f32 %v708, 0.01
    %v727 = vmul.f32 %v711, 0.01
    %v728 = vmul.f32 %v716, 0.01
    %v729 = vmul.f32 %v719, 0.01
    %v730 = vmax.f32 %v692, %v722
    %v731 = vmax.f32 %v695, %v723
    %v732 = vmax.f32 %v700, %v724
    %v733 = vmax.f32 %v703, %v725
    %v734 = vmax.f32 %v708, %v726
    %v735 = vmax.f32 %v711, %v727
    %v736 = vmax.f32 %v716, %v728
    %v737 = vmax.f32 %v719, %v729
    %v738 = vmul.f32 %v730, %v90
    %v739 = vmul.f32 %v731, %v91
    %v740 = vmul.f32 %v732, %v92
    %v741 = vmul.f32 %v733, %v93
    %v742 = vmul.f32 %v734, %v94
    %v743 = vmul.f32 %v735, %v95
    %v744 = vmul.f32 %v736, %v96
    %v745 = vmul.f32 %v737, %v97
    %v746 = vadd.f32 %v738, %v739
    %v747 = vadd.f32 %v746, %v740
    %v748 = vadd.f32 %v747, %v741
    %v749 = vadd.f32 %v748, %v742
    %v750 = vadd.f32 %v749, %v743
    %v751 = vadd.f32 %v750, %v744
    %v752 = vadd.f32 %v751, %v745
    %v753 = vrot.slane %v752, 4
    %v754 = vadd.f32 %v752, %v753
    %v755 = vrot.slane %v754, 2
    %v756 = vadd.f32 %v754, %v755
    %v757 = vrot.slane %v756, 1
    %v758 = vadd.f32 %v756, %v757
    %v759 = vmul.f32 %v738, %v730
    %v760 = vmul.f32 %v739, %v731
    %v761 = vmul.f32 %v740, %v732
    %v762 = vmul.f32 %v741, %v733
    %v763 = vmul.f32 %v742, %v734
    %v764 = vmul.f32 %v743, %v735
    %v765 = vmul.f32 %v744, %v736
    %v766 = vmul.f32 %v745, %v737
    %v767 = vadd.f32 %v759, %v760
    %v768 = vadd.f32 %v767, %v761
    %v769 = vadd.f32 %v768, %v762
    %v770 = vadd.f32 %v769, %v763
    %v771 = vadd.f32 %v770, %v764
    %v772 = vadd.f32 %v771, %v765
    %v773 = vadd.f32 %v772, %v766
    %v774 = vrot.slane %v773, 4
    %v775 = vadd.f32 %v773, %v774
    %v776 = vrot.slane %v775, 2
    %v777 = vadd.f32 %v775, %v776
    %v778 = vrot.slane %v777, 1
    %v779 = vadd.f32 %v777, %v778
    %v780 = vmul.f32 %v758, 0.016666668
    %v781 = vmul.f32 %v779, 0.016666668
    %v782 = vmul.f32 %v780, %v780
    %v783 = vsub.f32 %v781, %v782
    %v784 = vadd.f32 %v783, 1e-05
    %v785 = vrsqrt.pop %v784
    %v786 = vmul.f32 %v599, %v785
    %v787 = vlaneseq
    %v788 = vshrl.u32 %v787, 7
    %v789 = vsub.s32 0, %v788
    %v790 = vrot.slane %v786, %v789
    %v791 = vmul.f32 %v730, %v790
    %v792 = vmul.f32 %v731, %v790
    %v793 = vmul.f32 %v732, %v790
    %v794 = vmul.f32 %v733, %v790
    %v795 = vmul.f32 %v734, %v790
    %v796 = vmul.f32 %v735, %v790
    %v797 = vmul.f32 %v736, %v790
    %v798 = vmul.f32 %v737, %v790
    %v799 = vmul.f32 %v780, %v786
    %v800 = vsub.f32 %v600, %v799
    %v801 = vlaneseq
    %v802 = vshrl.u32 %v801, 7
    %v803 = vsub.s32 0, %v802
    %v804 = vrot.slane %v800, %v803
    %v805 = vadd.f32 %v791, %v804
    %v806 = vadd.f32 %v792, %v804
    %v807 = vadd.f32 %v793, %v804
    %v808 = vadd.f32 %v794, %v804
    %v809 = vadd.f32 %v795, %v804
    %v810 = vadd.f32 %v796, %v804
    %v811 = vadd.f32 %v797, %v804
    %v812 = vadd.f32 %v798, %v804
    %s813 = scalar_lea.vmem [#allocation5], 192
    %v814 = vld [vmem:[%s813] sm:$0xf]
    %v815 = vld [vmem:[%s813 + $0x4] sm:$0xf]
    %v816 = vld [vmem:[%s813 + $0x8] sm:$0xf]
    %v817 = vld [vmem:[%s813 + $0xc] sm:$0xf]
    %v818 = vld [vmem:[%s813 + $0x10] sm:$0xf]
    %v819 = vld [vmem:[%s813 + $0x14] sm:$0xf]
    %v820 = vld [vmem:[%s813 + $0x18] sm:$0xf]
    %v821 = vld [vmem:[%s813 + $0x1c] sm:$0xf]
    %v822 = vld [vmem:[%s813 + $0x20] sm:$0xf]
    %v823 = vld [vmem:[%s813 + $0x24] sm:$0xf]
    %v824 = vld [vmem:[%s813 + $0x28] sm:$0xf]
    %v825 = vld [vmem:[%s813 + $0x2c] sm:$0xf]
    %v826 = vld [vmem:[%s813 + $0x30] sm:$0xf]
    %v827 = vld [vmem:[%s813 + $0x34] sm:$0xf]
    %v828 = vld [vmem:[%s813 + $0x38] sm:$0xf]
    %v829 = vld [vmem:[%s813 + $0x3c] sm:$0xf]
    %v830 = vld [vmem:[#allocation7 + $0x9] sm:$0x1]
    %v831 = vld [vmem:[#allocation7 + $0xa] sm:$0x1]
    %v832 = vld [vmem:[#allocation7 + $0xb] sm:$0x1]
    %v833 = vpack.c.bf16 %v806, %v805
    %v834 = vpack.c.bf16 %v808, %v807
    %v835 = vpack.c.bf16 %v810, %v809
    %v836 = vpack.c.bf16 %v812, %v811
    %v837 = vlaneseq
    %v838 = vshrl.u32 %v837, 7
    %v839 = vsub.s32 0, %v838
    %v840 = vrot.slane %v830, %v839
    %v857 = vunpack.c.l.b16 %v814
    %v858 = vunpack.c.l.b16 %v815
    %v859 = vunpack.c.l.b16 %v816
    %v860 = vunpack.c.l.b16 %v817
    %v861 = vunpack.c.l.b16 %v818
    %v862 = vunpack.c.l.b16 %v819
    %v863 = vunpack.c.l.b16 %v820
    %v864 = vunpack.c.l.b16 %v821
    %v865 = vunpack.c.l.b16 %v822
    %v866 = vunpack.c.l.b16 %v823
    %v867 = vunpack.c.l.b16 %v824
    %v868 = vunpack.c.l.b16 %v825
    %v869 = vunpack.c.l.b16 %v826
    %v870 = vunpack.c.l.b16 %v827
    %v871 = vunpack.c.l.b16 %v828
    %v872 = vunpack.c.l.b16 %v829
    %v873 = vpack.c.b16 %v858, %v857
    %v874 = vpack.c.b16 %v860, %v859
    %v875 = vpack.c.b16 %v862, %v861
    %v876 = vpack.c.b16 %v864, %v863
    %v877 = vpack.c.b16 %v866, %v865
    %v878 = vpack.c.b16 %v868, %v867
    %v879 = vpack.c.b16 %v870, %v869
    %v880 = vpack.c.b16 %v872, %v871
    %889 = vmatprep.subr.bf16.mxu0 0
    %890 = vmatpush1.bf16.msra.mxu0 %v873
    %891 = vmatprep.subr.bf16.mxu0 0
    %892 = vmatpush1.bf16.msra.mxu0 %v874
    %893 = vmatprep.subr.bf16.mxu0 0
    %894 = vmatpush1.bf16.msra.mxu0 %v875
    %895 = vmatprep.subr.bf16.mxu0 0
    %896 = vmatpush1.bf16.msra.mxu0 %v876
    %897 = vmatprep.subr.bf16.mxu0 0
    %898 = vmatpush1.bf16.msra.mxu0 %v877
    %899 = vmatprep.subr.bf16.mxu0 0
    %900 = vmatpush1.bf16.msra.mxu0 %v878
    %901 = vmatprep.subr.bf16.mxu0 0
    %902 = vmatpush1.bf16.msra.mxu0 %v879
    %903 = vmatprep.subr.bf16.mxu0 0
    %904 = vmatpush1.bf16.msra.mxu0 %v880
    %905 = vmatprep.subr.bf16.mxu0 0
    %906 = vmatpush1.bf16.msra.mxu0 0
    %907 = vmatprep.subr.bf16.mxu0 0
    %908 = vmatpush1.bf16.msra.mxu0 0
    %909 = vmatprep.subr.bf16.mxu0 0
    %910 = vmatpush1.bf16.msra.mxu0 0
    %911 = vmatprep.subr.bf16.mxu0 0
    %912 = vmatpush1.bf16.msra.mxu0 0
    %913 = vmatprep.subr.bf16.mxu0 0
    %914 = vmatpush1.bf16.msra.mxu0 0
    %915 = vmatprep.subr.bf16.mxu0 0
    %916 = vmatpush1.bf16.msra.mxu0 0
    %917 = vmatprep.subr.bf16.mxu0 0
    %918 = vmatpush1.bf16.msra.mxu0 0
    %919 = vmatprep.subr.bf16.mxu0 0
    %920 = vmatpush1.bf16.msra.mxu0 0
    %921 = vmatprep.mubr.bf16.mxu0 0
    %922 = vmatmul.mubr.bf16.gmra.mrb[0].mxu0 %v833
    %v923 = vpop.f32.mrb[0].mxu0
    %v924 = vadd.f32 %v840, %v923
    %v925 = vpop.f32.mrb[0].mxu0
    %v926 = vpop.f32.mrb[0].mxu0
    %v927 = vadd.f32 %v840, %v926
    %v928 = vpop.f32.mrb[0].mxu0
    %929 = vmatprep.mubr.bf16.mxu0 0
    %930 = vmatmul.mubr.bf16.gmra.mrb[0].mxu0 %v834
    %v931 = vpop.f32.mrb[0].mxu0
    %v932 = vadd.f32 %v840, %v931
    %v933 = vpop.f32.mrb[0].mxu0
    %v934 = vpop.f32.mrb[0].mxu0
    %v935 = vadd.f32 %v840, %v934
    %v936 = vpop.f32.mrb[0].mxu0
    %937 = vmatprep.mubr.bf16.mxu0 0
    %938 = vmatmul.mubr.bf16.gmra.mrb[0].mxu0 %v835
    %v939 = vpop.f32.mrb[0].mxu0
    %v940 = vadd.f32 %v840, %v939
    %v941 = vpop.f32.mrb[0].mxu0
    %v942 = vpop.f32.mrb[0].mxu0
    %v943 = vadd.f32 %v840, %v942
    %v944 = vpop.f32.mrb[0].mxu0
    %945 = vmatprep.mubr.bf16.mxu0 0
    %946 = vmatmul.mubr.bf16.gmra.mrb[0].mxu0 %v836
    %v947 = vpop.f32.mrb[0].mxu0
    %v948 = vadd.f32 %v840, %v947
    %v949 = vpop.f32.mrb[0].mxu0
    %v950 = vpop.f32.mrb[0].mxu0
    %v951 = vadd.f32 %v840, %v950
    %v952 = vpop.f32.mrb[0].mxu0
    %953 = vdwg.mxu0
    %v954 = vmul.f32 %v924, 0.01
    %v955 = vmul.f32 %v927, 0.01
    %v956 = vmul.f32 %v932, 0.01
    %v957 = vmul.f32 %v935, 0.01
    %v958 = vmul.f32 %v940, 0.01
    %v959 = vmul.f32 %v943, 0.01
    %v960 = vmul.f32 %v948, 0.01
    %v961 = vmul.f32 %v951, 0.01
    %v962 = vmax.f32 %v924, %v954
    %v963 = vmax.f32 %v927, %v955
    %v964 = vmax.f32 %v932, %v956
    %v965 = vmax.f32 %v935, %v957
    %v966 = vmax.f32 %v940, %v958
    %v967 = vmax.f32 %v943, %v959
    %v968 = vmax.f32 %v948, %v960
    %v969 = vmax.f32 %v951, %v961
    %v970 = vmul.f32 %v962, %v90
    %v971 = vmul.f32 %v963, %v91
    %v972 = vmul.f32 %v964, %v92
    %v973 = vmul.f32 %v965, %v93
    %v974 = vmul.f32 %v966, %v94
    %v975 = vmul.f32 %v967, %v95
    %v976 = vmul.f32 %v968, %v96
    %v977 = vmul.f32 %v969, %v97
    %v978 = vadd.f32 %v970, %v971
    %v979 = vadd.f32 %v978, %v972
    %v980 = vadd.f32 %v979, %v973
    %v981 = vadd.f32 %v980, %v974
    %v982 = vadd.f32 %v981, %v975
    %v983 = vadd.f32 %v982, %v976
    %v984 = vadd.f32 %v983, %v977
    %v985 = vrot.slane %v984, 4
    %v986 = vadd.f32 %v984, %v985
    %v987 = vrot.slane %v986, 2
    %v988 = vadd.f32 %v986, %v987
    %v989 = vrot.slane %v988, 1
    %v990 = vadd.f32 %v988, %v989
    %v991 = vmul.f32 %v970, %v962
    %v992 = vmul.f32 %v971, %v963
    %v993 = vmul.f32 %v972, %v964
    %v994 = vmul.f32 %v973, %v965
    %v995 = vmul.f32 %v974, %v966
    %v996 = vmul.f32 %v975, %v967
    %v997 = vmul.f32 %v976, %v968
    %v998 = vmul.f32 %v977, %v969
    %v999 = vadd.f32 %v991, %v992
    %v1000 = vadd.f32 %v999, %v993
    %v1001 = vadd.f32 %v1000, %v994
    %v1002 = vadd.f32 %v1001, %v995
    %v1003 = vadd.f32 %v1002, %v996
    %v1004 = vadd.f32 %v1003, %v997
    %v1005 = vadd.f32 %v1004, %v998
    %v1006 = vrot.slane %v1005, 4
    %v1007 = vadd.f32 %v1005, %v1006
    %v1008 = vrot.slane %v1007, 2
    %v1009 = vadd.f32 %v1007, %v1008
    %v1010 = vrot.slane %v1009, 1
    %v1011 = vadd.f32 %v1009, %v1010
    %v1012 = vmul.f32 %v990, 0.016666668
    %v1013 = vmul.f32 %v1011, 0.016666668
    %v1014 = vmul.f32 %v1012, %v1012
    %v1015 = vsub.f32 %v1013, %v1014
    %v1016 = vadd.f32 %v1015, 1e-05
    %v1017 = vrsqrt.pop %v1016
    %v1018 = vmul.f32 %v831, %v1017
    %v1019 = vlaneseq
    %v1020 = vshrl.u32 %v1019, 7
    %v1021 = vsub.s32 0, %v1020
    %v1022 = vrot.slane %v1018, %v1021
    %v1023 = vmul.f32 %v962, %v1022
    %v1024 = vmul.f32 %v963, %v1022
    %v1025 = vmul.f32 %v964, %v1022
    %v1026 = vmul.f32 %v965, %v1022
    %v1027 = vmul.f32 %v966, %v1022
    %v1028 = vmul.f32 %v967, %v1022
    %v1029 = vmul.f32 %v968, %v1022
    %v1030 = vmul.f32 %v969, %v1022
    %v1031 = vmul.f32 %v1012, %v1018
    %v1032 = vsub.f32 %v832, %v1031
    %v1033 = vlaneseq
    %v1034 = vshrl.u32 %v1033, 7
    %v1035 = vsub.s32 0, %v1034
    %v1036 = vrot.slane %v1032, %v1035
    %v1037 = vadd.f32 %v1023, %v1036
    %v1038 = vadd.f32 %v1024, %v1036
    %v1039 = vadd.f32 %v1025, %v1036
    %v1040 = vadd.f32 %v1026, %v1036
    %v1041 = vadd.f32 %v1027, %v1036
    %v1042 = vadd.f32 %v1028, %v1036
    %v1043 = vadd.f32 %v1029, %v1036
    %v1044 = vadd.f32 %v1030, %v1036
    %s1045 = scalar_lea.vmem [#allocation5], 256
    %v1046 = vld [vmem:[%s1045] sm:$0xf]
    %v1047 = vld [vmem:[%s1045 + $0x4] sm:$0xf]
    %v1048 = vld [vmem:[%s1045 + $0x8] sm:$0xf]
    %v1049 = vld [vmem:[%s1045 + $0xc] sm:$0xf]
    %v1050 = vld [vmem:[%s1045 + $0x10] sm:$0xf]
    %v1051 = vld [vmem:[%s1045 + $0x14] sm:$0xf]
    %v1052 = vld [vmem:[%s1045 + $0x18] sm:$0xf]
    %v1053 = vld [vmem:[%s1045 + $0x1c] sm:$0xf]
    %v1054 = vld [vmem:[%s1045 + $0x20] sm:$0xf]
    %v1055 = vld [vmem:[%s1045 + $0x24] sm:$0xf]
    %v1056 = vld [vmem:[%s1045 + $0x28] sm:$0xf]
    %v1057 = vld [vmem:[%s1045 + $0x2c] sm:$0xf]
    %v1058 = vld [vmem:[%s1045 + $0x30] sm:$0xf]
    %v1059 = vld [vmem:[%s1045 + $0x34] sm:$0xf]
    %v1060 = vld [vmem:[%s1045 + $0x38] sm:$0xf]
    %v1061 = vld [vmem:[%s1045 + $0x3c] sm:$0xf]
    %v1062 = vld [vmem:[#allocation7 + $0xc] sm:$0x1]
    %v1063 = vld [vmem:[#allocation7 + $0xd] sm:$0x1]
    %v1064 = vld [vmem:[#allocation7 + $0xe] sm:$0x1]
    %v1065 = vpack.c.bf16 %v1038, %v1037
    %v1066 = vpack.c.bf16 %v1040, %v1039
    %v1067 = vpack.c.bf16 %v1042, %v1041
    %v1068 = vpack.c.bf16 %v1044, %v1043
    %v1069 = vlaneseq
    %v1070 = vshrl.u32 %v1069, 7
    %v1071 = vsub.s32 0, %v1070
    %v1072 = vrot.slane %v1062, %v1071
    %v1089 = vunpack.c.l.b16 %v1046
    %v1090 = vunpack.c.l.b16 %v1047
    %v1091 = vunpack.c.l.b16 %v1048
    %v1092 = vunpack.c.l.b16 %v1049
    %v1093 = vunpack.c.l.b16 %v1050
    %v1094 = vunpack.c.l.b16 %v1051
    %v1095 = vunpack.c.l.b16 %v1052
    %v1096 = vunpack.c.l.b16 %v1053
    %v1097 = vunpack.c.l.b16 %v1054
    %v1098 = vunpack.c.l.b16 %v1055
    %v1099 = vunpack.c.l.b16 %v1056
    %v1100 = vunpack.c.l.b16 %v1057
    %v1101 = vunpack.c.l.b16 %v1058
    %v1102 = vunpack.c.l.b16 %v1059
    %v1103 = vunpack.c.l.b16 %v1060
    %v1104 = vunpack.c.l.b16 %v1061
    %v1105 = vpack.c.b16 %v1090, %v1089
    %v1106 = vpack.c.b16 %v1092, %v1091
    %v1107 = vpack.c.b16 %v1094, %v1093
    %v1108 = vpack.c.b16 %v1096, %v1095
    %v1109 = vpack.c.b16 %v1098, %v1097
    %v1110 = vpack.c.b16 %v1100, %v1099
    %v1111 = vpack.c.b16 %v1102, %v1101
    %v1112 = vpack.c.b16 %v1104, %v1103
    %1121 = vmatprep.subr.bf16.mxu0 0
    %1122 = vmatpush1.bf16.msra.mxu0 %v1105
    %1123 = vmatprep.subr.bf16.mxu0 0
    %1124 = vmatpush1.bf16.msra.mxu0 %v1106
    %1125 = vmatprep.subr.bf16.mxu0 0
    %1126 = vmatpush1.bf16.msra.mxu0 %v1107
    %1127 = vmatprep.subr.bf16.mxu0 0
    %1128 = vmatpush1.bf16.msra.mxu0 %v1108
    %1129 = vmatprep.subr.bf16.mxu0 0
    %1130 = vmatpush1.bf16.msra.mxu0 %v1109
    %1131 = vmatprep.subr.bf16.mxu0 0
    %1132 = vmatpush1.bf16.msra.mxu0 %v1110
    %1133 = vmatprep.subr.bf16.mxu0 0
    %1134 = vmatpush1.bf16.msra.mxu0 %v1111
    %1135 = vmatprep.subr.bf16.mxu0 0
    %1136 = vmatpush1.bf16.msra.mxu0 %v1112
    %1137 = vmatprep.subr.bf16.mxu0 0
    %1138 = vmatpush1.bf16.msra.mxu0 0
    %1139 = vmatprep.subr.bf16.mxu0 0
    %1140 = vmatpush1.bf16.msra.mxu0 0
    %1141 = vmatprep.subr.bf16.mxu0 0
    %1142 = vmatpush1.bf16.msra.mxu0 0
    %1143 = vmatprep.subr.bf16.mxu0 0
    %1144 = vmatpush1.bf16.msra.mxu0 0
    %1145 = vmatprep.subr.bf16.mxu0 0
    %1146 = vmatpush1.bf16.msra.mxu0 0
    %1147 = vmatprep.subr.bf16.mxu0 0
    %1148 = vmatpush1.bf16.msra.mxu0 0
    %1149 = vmatprep.subr.bf16.mxu0 0
    %1150 = vmatpush1.bf16.msra.mxu0 0
    %1151 = vmatprep.subr.bf16.mxu0 0
    %1152 = vmatpush1.bf16.msra.mxu0 0
    %1153 = vmatprep.mubr.bf16.mxu0 0
    %1154 = vmatmul.mubr.bf16.gmra.mrb[0].mxu0 %v1065
    %v1155 = vpop.f32.mrb[0].mxu0
    %v1156 = vadd.f32 %v1072, %v1155
    %v1157 = vpop.f32.mrb[0].mxu0
    %v1158 = vpop.f32.mrb[0].mxu0
    %v1159 = vadd.f32 %v1072, %v1158
    %v1160 = vpop.f32.mrb[0].mxu0
    %1161 = vmatprep.mubr.bf16.mxu0 0
    %1162 = vmatmul.mubr.bf16.gmra.mrb[0].mxu0 %v1066
    %v1163 = vpop.f32.mrb[0].mxu0
    %v1164 = vadd.f32 %v1072, %v1163
    %v1165 = vpop.f32.mrb[0].mxu0
    %v1166 = vpop.f32.mrb[0].mxu0
    %v1167 = vadd.f32 %v1072, %v1166
    %v1168 = vpop.f32.mrb[0].mxu0
    %1169 = vmatprep.mubr.bf16.mxu0 0
    %1170 = vmatmul.mubr.bf16.gmra.mrb[0].mxu0 %v1067
    %v1171 = vpop.f32.mrb[0].mxu0
    %v1172 = vadd.f32 %v1072, %v1171
    %v1173 = vpop.f32.mrb[0].mxu0
    %v1174 = vpop.f32.mrb[0].mxu0
    %v1175 = vadd.f32 %v1072, %v1174
    %v1176 = vpop.f32.mrb[0].mxu0
    %1177 = vmatprep.mubr.bf16.mxu0 0
    %1178 = vmatmul.mubr.bf16.gmra.mrb[0].mxu0 %v1068
    %v1179 = vpop.f32.mrb[0].mxu0
    %v1180 = vadd.f32 %v1072, %v1179
    %v1181 = vpop.f32.mrb[0].mxu0
    %v1182 = vpop.f32.mrb[0].mxu0
    %v1183 = vadd.f32 %v1072, %v1182
    %v1184 = vpop.f32.mrb[0].mxu0
    %1185 = vdwg.mxu0
    %v1186 = vmul.f32 %v1156, 0.01
    %v1187 = vmul.f32 %v1159, 0.01
    %v1188 = vmul.f32 %v1164, 0.01
    %v1189 = vmul.f32 %v1167, 0.01
    %v1190 = vmul.f32 %v1172, 0.01
    %v1191 = vmul.f32 %v1175, 0.01
    %v1192 = vmul.f32 %v1180, 0.01
    %v1193 = vmul.f32 %v1183, 0.01
    %v1194 = vmax.f32 %v1156, %v1186
    %v1195 = vmax.f32 %v1159, %v1187
    %v1196 = vmax.f32 %v1164, %v1188
    %v1197 = vmax.f32 %v1167, %v1189
    %v1198 = vmax.f32 %v1172, %v1190
    %v1199 = vmax.f32 %v1175, %v1191
    %v1200 = vmax.f32 %v1180, %v1192
    %v1201 = vmax.f32 %v1183, %v1193
    %v1202 = vmul.f32 %v1194, %v90
    %v1203 = vmul.f32 %v1195, %v91
    %v1204 = vmul.f32 %v1196, %v92
    %v1205 = vmul.f32 %v1197, %v93
    %v1206 = vmul.f32 %v1198, %v94
    %v1207 = vmul.f32 %v1199, %v95
    %v1208 = vmul.f32 %v1200, %v96
    %v1209 = vmul.f32 %v1201, %v97
    %v1210 = vadd.f32 %v1202, %v1203
    %v1211 = vadd.f32 %v1210, %v1204
    %v1212 = vadd.f32 %v1211, %v1205
    %v1213 = vadd.f32 %v1212, %v1206
    %v1214 = vadd.f32 %v1213, %v1207
    %v1215 = vadd.f32 %v1214, %v1208
    %v1216 = vadd.f32 %v1215, %v1209
    %v1217 = vrot.slane %v1216, 4
    %v1218 = vadd.f32 %v1216, %v1217
    %v1219 = vrot.slane %v1218, 2
    %v1220 = vadd.f32 %v1218, %v1219
    %v1221 = vrot.slane %v1220, 1
    %v1222 = vadd.f32 %v1220, %v1221
    %v1223 = vmul.f32 %v1202, %v1194
    %v1224 = vmul.f32 %v1203, %v1195
    %v1225 = vmul.f32 %v1204, %v1196
    %v1226 = vmul.f32 %v1205, %v1197
    %v1227 = vmul.f32 %v1206, %v1198
    %v1228 = vmul.f32 %v1207, %v1199
    %v1229 = vmul.f32 %v1208, %v1200
    %v1230 = vmul.f32 %v1209, %v1201
    %v1231 = vadd.f32 %v1223, %v1224
    %v1232 = vadd.f32 %v1231, %v1225
    %v1233 = vadd.f32 %v1232, %v1226
    %v1234 = vadd.f32 %v1233, %v1227
    %v1235 = vadd.f32 %v1234, %v1228
    %v1236 = vadd.f32 %v1235, %v1229
    %v1237 = vadd.f32 %v1236, %v1230
    %v1238 = vrot.slane %v1237, 4
    %v1239 = vadd.f32 %v1237, %v1238
    %v1240 = vrot.slane %v1239, 2
    %v1241 = vadd.f32 %v1239, %v1240
    %v1242 = vrot.slane %v1241, 1
    %v1243 = vadd.f32 %v1241, %v1242
    %v1244 = vmul.f32 %v1222, 0.016666668
    %v1245 = vmul.f32 %v1243, 0.016666668
    %v1246 = vmul.f32 %v1244, %v1244
    %v1247 = vsub.f32 %v1245, %v1246
    %v1248 = vadd.f32 %v1247, 1e-05
    %v1249 = vrsqrt.pop %v1248
    %v1250 = vmul.f32 %v1063, %v1249
    %v1251 = vlaneseq
    %v1252 = vshrl.u32 %v1251, 7
    %v1253 = vsub.s32 0, %v1252
    %v1254 = vrot.slane %v1250, %v1253
    %v1255 = vmul.f32 %v1194, %v1254
    %v1256 = vmul.f32 %v1195, %v1254
    %v1257 = vmul.f32 %v1196, %v1254
    %v1258 = vmul.f32 %v1197, %v1254
    %v1259 = vmul.f32 %v1198, %v1254
    %v1260 = vmul.f32 %v1199, %v1254
    %v1261 = vmul.f32 %v1200, %v1254
    %v1262 = vmul.f32 %v1201, %v1254
    %v1263 = vmul.f32 %v1244, %v1250
    %v1264 = vsub.f32 %v1064, %v1263
    %v1265 = vlaneseq
    %v1266 = vshrl.u32 %v1265, 7
    %v1267 = vsub.s32 0, %v1266
    %v1268 = vrot.slane %v1264, %v1267
    %v1269 = vadd.f32 %v1255, %v1268
    %v1270 = vadd.f32 %v1256, %v1268
    %v1271 = vadd.f32 %v1257, %v1268
    %v1272 = vadd.f32 %v1258, %v1268
    %v1273 = vadd.f32 %v1259, %v1268
    %v1274 = vadd.f32 %v1260, %v1268
    %v1275 = vadd.f32 %v1261, %v1268
    %v1276 = vadd.f32 %v1262, %v1268
    %s1277 = scalar_lea.vmem [#allocation5], 320
    %v1278 = vld [vmem:[%s1277] sm:$0xf]
    %v1279 = vld [vmem:[%s1277 + $0x4] sm:$0xf]
    %v1280 = vld [vmem:[%s1277 + $0x8] sm:$0xf]
    %v1281 = vld [vmem:[%s1277 + $0xc] sm:$0xf]
    %v1282 = vld [vmem:[%s1277 + $0x10] sm:$0xf]
    %v1283 = vld [vmem:[%s1277 + $0x14] sm:$0xf]
    %v1284 = vld [vmem:[%s1277 + $0x18] sm:$0xf]
    %v1285 = vld [vmem:[%s1277 + $0x1c] sm:$0xf]
    %v1286 = vld [vmem:[%s1277 + $0x20] sm:$0xf]
    %v1287 = vld [vmem:[%s1277 + $0x24] sm:$0xf]
    %v1288 = vld [vmem:[%s1277 + $0x28] sm:$0xf]
    %v1289 = vld [vmem:[%s1277 + $0x2c] sm:$0xf]
    %v1290 = vld [vmem:[%s1277 + $0x30] sm:$0xf]
    %v1291 = vld [vmem:[%s1277 + $0x34] sm:$0xf]
    %v1292 = vld [vmem:[%s1277 + $0x38] sm:$0xf]
    %v1293 = vld [vmem:[%s1277 + $0x3c] sm:$0xf]
    %v1294 = vld [vmem:[#allocation7 + $0xf] sm:$0x1]
    %v1295 = vpack.c.bf16 %v1270, %v1269
    %v1296 = vpack.c.bf16 %v1272, %v1271
    %v1297 = vpack.c.bf16 %v1274, %v1273
    %v1298 = vpack.c.bf16 %v1276, %v1275
    %v1299 = vlaneseq
    %v1300 = vshrl.u32 %v1299, 7
    %v1301 = vsub.s32 0, %v1300
    %v1302 = vrot.slane %v1294, %v1301
    %v1319 = vunpack.c.l.b16 %v1278
    %v1320 = vunpack.c.l.b16 %v1279
    %v1321 = vunpack.c.l.b16 %v1280
    %v1322 = vunpack.c.l.b16 %v1281
    %v1323 = vunpack.c.l.b16 %v1282
    %v1324 = vunpack.c.l.b16 %v1283
    %v1325 = vunpack.c.l.b16 %v1284
    %v1326 = vunpack.c.l.b16 %v1285
    %v1327 = vunpack.c.l.b16 %v1286
    %v1328 = vunpack.c.l.b16 %v1287
    %v1329 = vunpack.c.l.b16 %v1288
    %v1330 = vunpack.c.l.b16 %v1289
    %v1331 = vunpack.c.l.b16 %v1290
    %v1332 = vunpack.c.l.b16 %v1291
    %v1333 = vunpack.c.l.b16 %v1292
    %v1334 = vunpack.c.l.b16 %v1293
    %v1335 = vpack.c.b16 %v1320, %v1319
    %v1336 = vpack.c.b16 %v1322, %v1321
    %v1337 = vpack.c.b16 %v1324, %v1323
    %v1338 = vpack.c.b16 %v1326, %v1325
    %v1339 = vpack.c.b16 %v1328, %v1327
    %v1340 = vpack.c.b16 %v1330, %v1329
    %v1341 = vpack.c.b16 %v1332, %v1331
    %v1342 = vpack.c.b16 %v1334, %v1333
    %1351 = vmatprep.subr.bf16.mxu0 0
    %1352 = vmatpush1.bf16.msra.mxu0 %v1335
    %1353 = vmatprep.subr.bf16.mxu0 0
    %1354 = vmatpush1.bf16.msra.mxu0 %v1336
    %1355 = vmatprep.subr.bf16.mxu0 0
    %1356 = vmatpush1.bf16.msra.mxu0 %v1337
    %1357 = vmatprep.subr.bf16.mxu0 0
    %1358 = vmatpush1.bf16.msra.mxu0 %v1338
    %1359 = vmatprep.subr.bf16.mxu0 0
    %1360 = vmatpush1.bf16.msra.mxu0 %v1339
    %1361 = vmatprep.subr.bf16.mxu0 0
    %1362 = vmatpush1.bf16.msra.mxu0 %v1340
    %1363 = vmatprep.subr.bf16.mxu0 0
    %1364 = vmatpush1.bf16.msra.mxu0 %v1341
    %1365 = vmatprep.subr.bf16.mxu0 0
    %1366 = vmatpush1.bf16.msra.mxu0 %v1342
    %1367 = vmatprep.subr.bf16.mxu0 0
    %1368 = vmatpush1.bf16.msra.mxu0 0
    %1369 = vmatprep.subr.bf16.mxu0 0
    %1370 = vmatpush1.bf16.msra.mxu0 0
    %1371 = vmatprep.subr.bf16.mxu0 0
    %1372 = vmatpush1.bf16.msra.mxu0 0
    %1373 = vmatprep.subr.bf16.mxu0 0
    %1374 = vmatpush1.bf16.msra.mxu0 0
    %1375 = vmatprep.subr.bf16.mxu0 0
    %1376 = vmatpush1.bf16.msra.mxu0 0
    %1377 = vmatprep.subr.bf16.mxu0 0
    %1378 = vmatpush1.bf16.msra.mxu0 0
    %1379 = vmatprep.subr.bf16.mxu0 0
    %1380 = vmatpush1.bf16.msra.mxu0 0
    %1381 = vmatprep.subr.bf16.mxu0 0
    %1382 = vmatpush1.bf16.msra.mxu0 0
    %1383 = vmatprep.mubr.bf16.mxu0 0
    %1384 = vmatmul.mubr.bf16.gmra.mrb[0].mxu0 %v1295
    %v1385 = vpop.f32.mrb[0].mxu0
    %v1386 = vadd.f32 %v1302, %v1385
    %v1387 = vpop.f32.mrb[0].mxu0
    %v1388 = vpop.f32.mrb[0].mxu0
    %v1389 = vadd.f32 %v1302, %v1388
    %v1390 = vpop.f32.mrb[0].mxu0
    %1391 = vmatprep.mubr.bf16.mxu0 0
    %1392 = vmatmul.mubr.bf16.gmra.mrb[0].mxu0 %v1296
    %v1393 = vpop.f32.mrb[0].mxu0
    %v1394 = vadd.f32 %v1302, %v1393
    %v1395 = vpop.f32.mrb[0].mxu0
    %v1396 = vpop.f32.mrb[0].mxu0
    %v1397 = vadd.f32 %v1302, %v1396
    %v1398 = vpop.f32.mrb[0].mxu0
    %1399 = vmatprep.mubr.bf16.mxu0 0
    %1400 = vmatmul.mubr.bf16.gmra.mrb[0].mxu0 %v1297
    %v1401 = vpop.f32.mrb[0].mxu0
    %v1402 = vadd.f32 %v1302, %v1401
    %v1403 = vpop.f32.mrb[0].mxu0
    %v1404 = vpop.f32.mrb[0].mxu0
    %v1405 = vadd.f32 %v1302, %v1404
    %v1406 = vpop.f32.mrb[0].mxu0
    %1407 = vmatprep.mubr.bf16.mxu0 0
    %1408 = vmatmul.mubr.bf16.gmra.mrb[0].mxu0 %v1298
    %v1409 = vpop.f32.mrb[0].mxu0
    %v1410 = vadd.f32 %v1302, %v1409
    %v1411 = vpop.f32.mrb[0].mxu0
    %v1412 = vpop.f32.mrb[0].mxu0
    %v1413 = vadd.f32 %v1302, %v1412
    %v1414 = vpop.f32.mrb[0].mxu0
    %1415 = vdwg.mxu0
    %v1416 = vlaneseq
    %v1417 = vand.u32 %v1416, 127
    %vm1418 = vcmp.lt.s32.totalorder %v1417, 10
    %v1419 = vsel %vm1418, 1, 0
    %vm1420 = vcmp.eq.s32.totalorder %v1419, 1
    %v1421 = vsel %vm1420, %v1386, -1e+30
    %v1422 = vsel %vm1420, %v1389, -1e+30
    %v1423 = vsel %vm1420, %v1394, -1e+30
    %v1424 = vsel %vm1420, %v1397, -1e+30
    %v1425 = vsel %vm1420, %v1402, -1e+30
    %v1426 = vsel %vm1420, %v1405, -1e+30
    %v1427 = vsel %vm1420, %v1410, -1e+30
    %v1428 = vsel %vm1420, %v1413, -1e+30
    %1429 = vmax.xlane.f32.xlu0 %v1421
    %v1430 = vpop.xlane.xlu0 %1429
    %1431 = vmax.xlane.f32.xlu0 %v1422
    %v1432 = vpop.xlane.xlu0 %1431
    %1433 = vmax.xlane.f32.xlu0 %v1423
    %v1434 = vpop.xlane.xlu0 %1433
    %1435 = vmax.xlane.f32.xlu0 %v1424
    %v1436 = vpop.xlane.xlu0 %1435
    %1437 = vmax.xlane.f32.xlu0 %v1425
    %v1438 = vpop.xlane.xlu0 %1437
    %1439 = vmax.xlane.f32.xlu0 %v1426
    %v1440 = vpop.xlane.xlu0 %1439
    %1441 = vmax.xlane.f32.xlu0 %v1427
    %v1442 = vpop.xlane.xlu0 %1441
    %1443 = vmax.xlane.f32.xlu0 %v1428
    %v1444 = vpop.xlane.xlu0 %1443
    %v1445 = vsub.f32 %v1421, %v1430
    %v1446 = vsub.f32 %v1422, %v1432
    %v1447 = vsub.f32 %v1423, %v1434
    %v1448 = vsub.f32 %v1424, %v1436
    %v1449 = vsub.f32 %v1425, %v1438
    %v1450 = vsub.f32 %v1426, %v1440
    %v1451 = vsub.f32 %v1427, %v1442
    %v1452 = vsub.f32 %v1428, %v1444
    %v1453 = vmul.f32 %v1445, 1.442695
    %v1454 = vpow.pop %v1453
    %v1455 = vmul.f32 %v1446, 1.442695
    %v1456 = vpow.pop %v1455
    %v1457 = vmul.f32 %v1447, 1.442695
    %v1458 = vpow.pop %v1457
    %v1459 = vmul.f32 %v1448, 1.442695
    %v1460 = vpow.pop %v1459
    %v1461 = vmul.f32 %v1449, 1.442695
    %v1462 = vpow.pop %v1461
    %v1463 = vmul.f32 %v1450, 1.442695
    %v1464 = vpow.pop %v1463
    %v1465 = vmul.f32 %v1451, 1.442695
    %v1466 = vpow.pop %v1465
    %v1467 = vmul.f32 %v1452, 1.442695
    %v1468 = vpow.pop %v1467
    %1469 = vadd.xlane.f32.xlu0 %v1454
    %v1470 = vpop.xlane.xlu0 %1469
    %1471 = vadd.xlane.f32.xlu0 %v1456
    %v1472 = vpop.xlane.xlu0 %1471
    %1473 = vadd.xlane.f32.xlu0 %v1458
    %v1474 = vpop.xlane.xlu0 %1473
    %1475 = vadd.xlane.f32.xlu0 %v1460
    %v1476 = vpop.xlane.xlu0 %1475
    %1477 = vadd.xlane.f32.xlu0 %v1462
    %v1478 = vpop.xlane.xlu0 %1477
    %1479 = vadd.xlane.f32.xlu0 %v1464
    %v1480 = vpop.xlane.xlu0 %1479
    %1481 = vadd.xlane.f32.xlu0 %v1466
    %v1482 = vpop.xlane.xlu0 %1481
    %1483 = vadd.xlane.f32.xlu0 %v1468
    %v1484 = vpop.xlane.xlu0 %1483
    %v1485 = vrcp.pop %v1470
    %v1486 = vrcp.pop %v1472
    %v1487 = vrcp.pop %v1474
    %v1488 = vrcp.pop %v1476
    %v1489 = vrcp.pop %v1478
    %v1490 = vrcp.pop %v1480
    %v1491 = vrcp.pop %v1482
    %v1492 = vrcp.pop %v1484
    %v1493 = vmul.f32 %v1454, %v1485
    %v1494 = vmul.f32 %v1456, %v1486
    %v1495 = vmul.f32 %v1458, %v1487
    %v1496 = vmul.f32 %v1460, %v1488
    %v1497 = vmul.f32 %v1462, %v1489
    %v1498 = vmul.f32 %v1464, %v1490
    %v1499 = vmul.f32 %v1466, %v1491
    %v1500 = vmul.f32 %v1468, %v1492
    %1501 = vst [vmem:[#allocation8] sm:$0xff] %v1493
    %1502 = vst [vmem:[#allocation8 + $0x8] sm:$0xff] %v1494
    %1503 = vst [vmem:[#allocation8 + $0x10] sm:$0xff] %v1495
    %1504 = vst [vmem:[#allocation8 + $0x18] sm:$0xff] %v1496
    %1505 = vst [vmem:[#allocation8 + $0x20] sm:$0xff] %v1497
    %1506 = vst [vmem:[#allocation8 + $0x28] sm:$0xff] %v1498
    %1507 = vst [vmem:[#allocation8 + $0x30] sm:$0xff] %v1499
    %1508 = vst [vmem:[#allocation8 + $0x38] sm:$0xff] %v1500
    // Predicated region
    $region26: #{tpu_custom_call.1} parent=1 // pred_check
      _
    $region27: #{tpu_custom_call.1} parent=1 // pred_check_branch
      %1510 = sbr.rel (0) target = $region29
    $region28: #{tpu_custom_call.1} parent=1 // pred_region
      %s1512 = ssub.s32 1024, 1024
      %1513 = vsyncadd [#allocation4], %s1512
      %s1514 = sshll.u32 [#allocation8], 4
      %s1515 = int_to_ptr.vmem [resolvable:$true] %s1514
      %1520 = dma.vmem_to_hbm [thread:$0]  %s1515, 1024, %s3, [#allocation4], 128, 128, 8
    $region29: #{tpu_custom_call.1} parent=1 // pred_fallthru
      _
    // Predicated region
    $region30: #{tpu_custom_call.1} parent=1 // pred_check
      _
    $region31: #{tpu_custom_call.1} parent=1 // pred_check_branch
      %1522 = sbr.rel (0) target = $region33
    $region32: #{tpu_custom_call.1} parent=1 // pred_region
      %1523 = dma.done [#allocation4], 1024
    $region33: #{tpu_custom_call.1} parent=1 // pred_fallthru
      _
    %1524 = vsyncpa [#allocation3], 1
    %1525 = vsyncpa [#allocation6], 1
    %1526 = vsyncpa [#allocation4], 1

</llo_original>
